<compile_context>
chip_gen: v7x
topology: tpu7x:2x2x1
jax: 0.10.0
libtpu: 0.0.40
codegen_flags: <defaults>
</compile_context>

<pallas_src>
import math

import jax
import jax.numpy as jnp
from jax import lax
from jax.experimental import pallas as pl
from jax.experimental.pallas import tpu as pltpu

# ----------------------------- model config -----------------------------
B = 2        # batch
S = 8        # sequence length
D = 32       # d_model
H = 4        # attention heads
HD = D // H  # head dim
FFN = 64     # feed-forward dim
EPS = 1e-5
NEG_INF = -1e9

VEC_W = 3 * D  # lane width of the packed small-vector slab (>= FFN)
# rows of the packed [8, VEC_W] small-vector slab
ROW_BQKV, ROW_BO, ROW_B1, ROW_B2 = 0, 1, 2, 3
ROW_LN1G, ROW_LN1B, ROW_LN2G, ROW_LN2B = 4, 5, 6, 7


def _gelu_tanh(x):
    # TODO(synk): HF BART uses exact (erf) GELU; tanh approx differs at ~1e-3.
    c = math.sqrt(2.0 / math.pi)
    return 0.5 * x * (1.0 + jnp.tanh(c * (x + 0.044715 * x * x * x)))


def _layer_norm(x, gamma, beta):
    mean = jnp.mean(x, axis=-1, keepdims=True)
    var = jnp.mean((x - mean) ** 2, axis=-1, keepdims=True)
    return (x - mean) * lax.rsqrt(var + EPS) * gamma + beta


def bart_encoder_layer_kernel(h_ref, mask_ref, wqkv_ref, wo_ref,
                              w1_ref, w2_ref, vec_ref, out_ref):
    # One grid step == one batch element; the grid axis is "parallel".
    h = h_ref[0].astype(jnp.float32)        # [S, D], f32 residual path
    mask = mask_ref[0]                       # [S, S], f32 additive mask

    # packed small-vector slab: one [8, 3D] VMEM tile instead of 8 inputs
    bqkv  = vec_ref[ROW_BQKV:ROW_BQKV + 1, :]        # [1, 3D]
    bo    = vec_ref[ROW_BO:ROW_BO + 1, :D]           # [1, D]
    b1    = vec_ref[ROW_B1:ROW_B1 + 1, :FFN]         # [1, FFN]
    b2    = vec_ref[ROW_B2:ROW_B2 + 1, :D]
    ln1_g = vec_ref[ROW_LN1G:ROW_LN1G + 1, :D]
    ln1_b = vec_ref[ROW_LN1B:ROW_LN1B + 1, :D]
    ln2_g = vec_ref[ROW_LN2G:ROW_LN2G + 1, :D]
    ln2_b = vec_ref[ROW_LN2B:ROW_LN2B + 1, :D]

    # fused QKV projection: single bf16 MXU push, f32 accumulate
    qkv = jnp.dot(h.astype(jnp.bfloat16), wqkv_ref[...],
                  preferred_element_type=jnp.float32) + bqkv
    scale = 1.0 / math.sqrt(HD)
    q = (qkv[:, 0 * D:1 * D] * scale).astype(jnp.bfloat16)
    k = qkv[:, 1 * D:2 * D].astype(jnp.bfloat16)
    v = qkv[:, 2 * D:3 * D].astype(jnp.bfloat16)

    wo_m = wo_ref[...]   # bf16 [D, D], loaded once, sliced per head

    # Output projection folded into the head loop: no ctx scratch slab,
    # no masked partial stores, no VMEM round trip.
    # TODO(synk): at real BART dims (HD=64) batch all heads into one
    # dot_general with a head batch dim instead of a static head loop.
    attn = jnp.broadcast_to(bo, (S, D))     # start from output-proj bias (f32)
    for hh in range(H):
        sl = slice(hh * HD, (hh + 1) * HD)
        s = lax.dot_general(q[:, sl], k[:, sl],
                            dimension_numbers=(((1,), (1,)), ((), ())),
                            preferred_element_type=jnp.float32) + mask
        s = s - jnp.max(s, axis=-1, keepdims=True)
        p = jnp.exp(s)                                   # f32 (v5e: no bf16 EUP)
        p = p * pl.reciprocal(jnp.sum(p, axis=-1, keepdims=True), approx=True)
        ctx_h = jnp.dot(p.astype(jnp.bfloat16), v[:, sl],
                        preferred_element_type=jnp.float32)       # [S, HD]
        attn = attn + jnp.dot(ctx_h.astype(jnp.bfloat16), wo_m[sl, :],
                              preferred_element_type=jnp.float32)  # [S, D]

    h1 = _layer_norm(h + attn, ln1_g, ln1_b)             # f32 elementwise

    # ---- feed-forward: bf16 MXU operands, f32 accumulate + elementwise ----
    f = jnp.dot(h1.astype(jnp.bfloat16), w1_ref[...],
                preferred_element_type=jnp.float32) + b1
    f = _gelu_tanh(f)
    f = jnp.dot(f.astype(jnp.bfloat16), w2_ref[...],
                preferred_element_type=jnp.float32) + b2

    # TODO(synk): at D=32 only 32/128 lanes of the output tile are live
    # (masked vst); at real D=768 the store is lane-dense and this is moot.
    out_ref[0, :, :] = _layer_norm(h1 + f, ln2_g, ln2_b).astype(out_ref.dtype)


def _wspec(shape):
    # grid-invariant whole-array block (same block every grid step)
    return pl.BlockSpec(shape, lambda b: (0, 0))


@jax.jit
def bart_encoder_layer(hidden_states, attention_mask, kparams):
    """Pallas forward of the wrapped BART encoder layer."""
    wqkv, wo, w1, w2, vec = kparams
    b_, s_, d_ = hidden_states.shape

    return pl.pallas_call(
        bart_encoder_layer_kernel,
        out_shape=jax.ShapeDtypeStruct((b_, s_, d_), hidden_states.dtype),
        grid_spec=pltpu.PrefetchScalarGridSpec(
            num_scalar_prefetch=0,
            grid=(b_,),                                  # one step per batch
            in_specs=[
                pl.BlockSpec((1, s_, d_), lambda b: (b, 0, 0)),   # hidden
                pl.BlockSpec((1, s_, s_), lambda b: (b, 0, 0)),   # [S,S] mask
                _wspec(wqkv.shape),                               # [D, 3D] bf16
                _wspec(wo.shape),                                 # [D, D]  bf16
                _wspec(w1.shape),                                 # [D, FFN] bf16
                _wspec(w2.shape),                                 # [FFN, D] bf16
                _wspec(vec.shape),                                # [8, 3D] f32 slab
            ],
            out_specs=pl.BlockSpec((1, s_, d_), lambda b: (b, 0, 0)),
        ),
        # TODO(synk): at real BART dims, raise vmem_limit_bytes, single-buffer
        # the grid-invariant weight specs (pipeline_mode=pl.Buffered(1)) and
        # row-tile the sequence dimension per generation (256 v6e/v7x, 128 v5e).
        compiler_params=pltpu.CompilerParams(
            dimension_semantics=("parallel",)),          # both TCs on v7x
    )(hidden_states.astype(jnp.float32),
      attention_mask.astype(jnp.float32),
      wqkv, wo, w1, w2, vec)


def checkpoint_wrapper_bart_forward(hidden_states, attention_mask, kparams,
                                    use_checkpoint=False, training=False):
    """CheckpointWrapper_bart.forward semantics.

    Gradient checkpointing is a training-time memory optimization with no
    effect on forward values; eval / use_checkpoint=False path shown.
    Returns a tuple, matching the PyTorch module's tuple output.
    """
    # TODO(synk): torch.utils.checkpoint recompute-in-backward has no forward
    # effect; jax.checkpoint would be the analogue if training were needed.
    out = bart_encoder_layer(hidden_states, attention_mask, kparams)
    return (out,)


# ----------------------------- params ------------------------------------
def init_params(key):
    ks = jax.random.split(key, 8)
    std = 0.02
    wq = jax.random.normal(ks[0], (D, D), jnp.float32) * std
    wk = jax.random.normal(ks[1], (D, D), jnp.float32) * std
    wv = jax.random.normal(ks[2], (D, D), jnp.float32) * std
    wo = jax.random.normal(ks[3], (D, D), jnp.float32) * std
    w1 = jax.random.normal(ks[4], (D, FFN), jnp.float32) * std
    w2 = jax.random.normal(ks[5], (FFN, D), jnp.float32) * std
    bq = jnp.zeros((1, D), jnp.float32)
    bk = jnp.zeros((1, D), jnp.float32)
    bv = jnp.zeros((1, D), jnp.float32)
    bo = jnp.zeros((1, D), jnp.float32)
    b1 = jnp.zeros((1, FFN), jnp.float32)
    b2 = jnp.zeros((1, D), jnp.float32)
    ln1_g = jnp.ones((1, D), jnp.float32)
    ln1_b = jnp.zeros((1, D), jnp.float32)
    ln2_g = jnp.ones((1, D), jnp.float32)
    ln2_b = jnp.zeros((1, D), jnp.float32)
    return (wq, bq, wk, bk, wv, bv, wo, bo,
            ln1_g, ln1_b, w1, b1, w2, b2, ln2_g, ln2_b)


def prepare_kernel_params(params):
    """One-time (outside the jitted hot path) packing of params for the kernel:
    fused bf16 QKV weight, bf16 matmul weights, and a single [8, 3D] f32 slab
    holding all bias / LayerNorm vectors."""
    (wq, bq, wk, bk, wv, bv, wo, bo,
     ln1_g, ln1_b, w1, b1, w2, b2, ln2_g, ln2_b) = params
    wqkv = jnp.concatenate([wq, wk, wv], axis=1).astype(jnp.bfloat16)  # [D,3D]
    vec = jnp.zeros((8, VEC_W), jnp.float32)
    vec = vec.at[ROW_BQKV, :3 * D].set(jnp.concatenate([bq, bk, bv], axis=1)[0])
    vec = vec.at[ROW_BO, :D].set(bo[0])
    vec = vec.at[ROW_B1, :FFN].set(b1[0])
    vec = vec.at[ROW_B2, :D].set(b2[0])
    vec = vec.at[ROW_LN1G, :D].set(ln1_g[0])
    vec = vec.at[ROW_LN1B, :D].set(ln1_b[0])
    vec = vec.at[ROW_LN2G, :D].set(ln2_g[0])
    vec = vec.at[ROW_LN2B, :D].set(ln2_b[0])
    return (wqkv,
            wo.astype(jnp.bfloat16),
            w1.astype(jnp.bfloat16),
            w2.astype(jnp.bfloat16),
            vec)


# ----------------------------- reference ---------------------------------
def bart_encoder_layer_ref(hidden_states, attention_mask, params):
    """Pure-JAX f32 reference (per-batch, per-head) for correctness checking."""
    (wq, bq, wk, bk, wv, bv, wo, bo,
     ln1_g, ln1_b, w1, b1, w2, b2, ln2_g, ln2_b) = params
    h = hidden_states.astype(jnp.float32)
    q = h @ wq + bq
    k = h @ wk + bk
    v = h @ wv + bv
    scale = 1.0 / math.sqrt(HD)
    ctx = []
    for bb in range(h.shape[0]):
        heads = []
        for hh in range(H):
            sl = slice(hh * HD, (hh + 1) * HD)
            s = (q[bb][:, sl] * scale) @ k[bb][:, sl].T + attention_mask[bb]
            p = jax.nn.softmax(s, axis=-1)
            heads.append(p @ v[bb][:, sl])
        ctx.append(jnp.concatenate(heads, axis=-1))
    ctx = jnp.stack(ctx, axis=0)
    attn = ctx @ wo + bo
    h1 = _layer_norm(h + attn, ln1_g, ln1_b)
    f = _gelu_tanh(h1 @ w1 + b1)
    f = f @ w2 + b2
    return _layer_norm(h1 + f, ln2_g, ln2_b)


if __name__ == "__main__":
    key = jax.random.PRNGKey(0)
    k_h, k_m, k_p = jax.random.split(key, 3)

    hidden_states = jax.random.normal(k_h, (B, S, D), jnp.float32)

    # additive attention mask: last two key positions of each sequence masked
    keep = jnp.arange(S) < (S - 2)
    mask_row = jnp.where(keep, 0.0, NEG_INF).astype(jnp.float32)
    attention_mask = jnp.broadcast_to(mask_row[None, None, :], (B, S, S))

    params = init_params(k_p)
    kparams = prepare_kernel_params(params)   # once, outside the hot path

    out = checkpoint_wrapper_bart_forward(hidden_states, attention_mask, kparams)
    jax.block_until_ready(out[0])

    ref = bart_encoder_layer_ref(hidden_states, attention_mask, params)

    assert out[0].shape == (B, S, D)
    assert jnp.all(jnp.isfinite(out[0]))
    # tolerance: bf16 MXU operands + approx softmax reciprocal vs. f32 reference
    assert jnp.allclose(out[0], ref, atol=1e-2, rtol=1e-2)
    print("KERNEL_OK")
</pallas_src>

<mosaic_0001>
module attributes {stable_mosaic.version = 11 : i64} {
  func.func @bart_encoder_layer_kernel(%arg0: i32, %arg1: memref<1x8x32xf32, #tpu.memory_space<vmem>>, %arg2: memref<1x8x8xf32, #tpu.memory_space<vmem>>, %arg3: memref<32x96xbf16, #tpu.memory_space<vmem>>, %arg4: memref<32x32xbf16, #tpu.memory_space<vmem>>, %arg5: memref<32x64xbf16, #tpu.memory_space<vmem>>, %arg6: memref<64x32xbf16, #tpu.memory_space<vmem>>, %arg7: memref<8x96xf32, #tpu.memory_space<vmem>>, %arg8: memref<1x8x32xf32, #tpu.memory_space<vmem>>) attributes {dimension_semantics = [#tpu.dimension_semantics<parallel>], iteration_bounds = array<i64: 2>, scalar_prefetch = 0 : i64, scratch_operands = 0 : i64, tpu.core_type = #tpu.core_type<tc>, window_params = [{transform_indices = @transform_0, window_bounds = array<i64: 1, 8, 32>}, {transform_indices = @transform_1, window_bounds = array<i64: 1, 8, 8>}, {pipeline_mode = #tpu.pipeline_mode<synchronous>, transform_indices = @transform_2, window_bounds = array<i64: 32, 96>}, {pipeline_mode = #tpu.pipeline_mode<synchronous>, transform_indices = @transform_3, window_bounds = array<i64: 32, 32>}, {pipeline_mode = #tpu.pipeline_mode<synchronous>, transform_indices = @transform_4, window_bounds = array<i64: 32, 64>}, {pipeline_mode = #tpu.pipeline_mode<synchronous>, transform_indices = @transform_5, window_bounds = array<i64: 64, 32>}, {pipeline_mode = #tpu.pipeline_mode<synchronous>, transform_indices = @transform_6, window_bounds = array<i64: 8, 96>}, {transform_indices = @transform_7, window_bounds = array<i64: 1, 8, 32>}]} {
    %c0 = arith.constant 0 : index
    %c0_0 = arith.constant 0 : index
    %c0_1 = arith.constant 0 : index
    %0 = vector.load %arg1[%c0, %c0_0, %c0_1] : memref<1x8x32xf32, #tpu.memory_space<vmem>>, vector<1x8x32xf32>
    %1 = vector.shape_cast %0 : vector<1x8x32xf32> to vector<8x32xf32>
    %c0_2 = arith.constant 0 : index
    %c0_3 = arith.constant 0 : index
    %c0_4 = arith.constant 0 : index
    %2 = vector.load %arg2[%c0_2, %c0_3, %c0_4] : memref<1x8x8xf32, #tpu.memory_space<vmem>>, vector<1x8x8xf32>
    %3 = vector.shape_cast %2 : vector<1x8x8xf32> to vector<8x8xf32>
    %c0_5 = arith.constant 0 : index
    %c0_6 = arith.constant 0 : index
    %4 = vector.load %arg7[%c0_5, %c0_6] : memref<8x96xf32, #tpu.memory_space<vmem>>, vector<1x96xf32>
    %c1 = arith.constant 1 : index
    %c0_7 = arith.constant 0 : index
    %5 = vector.load %arg7[%c1, %c0_7] : memref<8x96xf32, #tpu.memory_space<vmem>>, vector<1x32xf32>
    %c2 = arith.constant 2 : index
    %c0_8 = arith.constant 0 : index
    %6 = vector.load %arg7[%c2, %c0_8] : memref<8x96xf32, #tpu.memory_space<vmem>>, vector<1x64xf32>
    %c3 = arith.constant 3 : index
    %c0_9 = arith.constant 0 : index
    %7 = vector.load %arg7[%c3, %c0_9] : memref<8x96xf32, #tpu.memory_space<vmem>>, vector<1x32xf32>
    %c4 = arith.constant 4 : index
    %c0_10 = arith.constant 0 : index
    %8 = vector.load %arg7[%c4, %c0_10] : memref<8x96xf32, #tpu.memory_space<vmem>>, vector<1x32xf32>
    %c5 = arith.constant 5 : index
    %c0_11 = arith.constant 0 : index
    %9 = vector.load %arg7[%c5, %c0_11] : memref<8x96xf32, #tpu.memory_space<vmem>>, vector<1x32xf32>
    %c6 = arith.constant 6 : index
    %c0_12 = arith.constant 0 : index
    %10 = vector.load %arg7[%c6, %c0_12] : memref<8x96xf32, #tpu.memory_space<vmem>>, vector<1x32xf32>
    %c7 = arith.constant 7 : index
    %c0_13 = arith.constant 0 : index
    %11 = vector.load %arg7[%c7, %c0_13] : memref<8x96xf32, #tpu.memory_space<vmem>>, vector<1x32xf32>
    %12 = arith.truncf %1 : vector<8x32xf32> to vector<8x32xbf16>
    %c0_14 = arith.constant 0 : index
    %c0_15 = arith.constant 0 : index
    %13 = vector.load %arg3[%c0_14, %c0_15] : memref<32x96xbf16, #tpu.memory_space<vmem>>, vector<32x96xbf16>
    %cst = arith.constant dense<0.000000e+00> : vector<8x96xf32>
    %14 = tpu.matmul %12, %13, %cst {dimension_numbers = #tpu.dot_dimension_numbers<[1], [0], [0], [1], [0, 0, 1, 1], [], []>} : vector<8x32xbf16>, vector<32x96xbf16>, vector<8x96xf32> -> vector<8x96xf32>
    %15 = vector.broadcast %4 : vector<1x96xf32> to vector<8x96xf32>
    %16 = arith.addf %14, %15 : vector<8x96xf32>
    %17 = vector.extract_strided_slice %16 {offsets = [0, 0], sizes = [8, 32], strides = [1, 1]} : vector<8x96xf32> to vector<8x32xf32>
    %cst_16 = arith.constant 0.353553385 : f32
    %18 = vector.broadcast %cst_16 : f32 to vector<8x32xf32>
    %19 = arith.mulf %17, %18 : vector<8x32xf32>
    %20 = arith.truncf %19 : vector<8x32xf32> to vector<8x32xbf16>
    %21 = vector.extract_strided_slice %16 {offsets = [0, 32], sizes = [8, 32], strides = [1, 1]} : vector<8x96xf32> to vector<8x32xf32>
    %22 = arith.truncf %21 : vector<8x32xf32> to vector<8x32xbf16>
    %23 = vector.extract_strided_slice %16 {offsets = [0, 64], sizes = [8, 32], strides = [1, 1]} : vector<8x96xf32> to vector<8x32xf32>
    %24 = arith.truncf %23 : vector<8x32xf32> to vector<8x32xbf16>
    %c0_17 = arith.constant 0 : index
    %c0_18 = arith.constant 0 : index
    %25 = vector.load %arg4[%c0_17, %c0_18] : memref<32x32xbf16, #tpu.memory_space<vmem>>, vector<32x32xbf16>
    %26 = vector.shape_cast %5 : vector<1x32xf32> to vector<1x32xf32>
    %27 = vector.broadcast %26 : vector<1x32xf32> to vector<8x32xf32>
    %28 = vector.extract_strided_slice %20 {offsets = [0, 0], sizes = [8, 8], strides = [1, 1]} : vector<8x32xbf16> to vector<8x8xbf16>
    %29 = vector.extract_strided_slice %22 {offsets = [0, 0], sizes = [8, 8], strides = [1, 1]} : vector<8x32xbf16> to vector<8x8xbf16>
    %cst_19 = arith.constant dense<0.000000e+00> : vector<8x8xf32>
    %30 = tpu.matmul %28, %29, %cst_19 {dimension_numbers = #tpu.dot_dimension_numbers<[1], [1], [0], [0], [0, 0, 1, 0], [], []>} : vector<8x8xbf16>, vector<8x8xbf16>, vector<8x8xf32> -> vector<8x8xf32>
    %31 = arith.addf %30, %3 : vector<8x8xf32>
    %cst_20 = arith.constant dense<0xFF800000> : vector<8xf32>
    %32 = vector.multi_reduction <maximumf>, %31, %cst_20 [1] : vector<8x8xf32> to vector<8xf32>
    %33 = vector.shape_cast %32 : vector<8xf32> to vector<8x1xf32>
    %34 = vector.broadcast %33 : vector<8x1xf32> to vector<8x8xf32>
    %35 = arith.subf %31, %34 : vector<8x8xf32>
    %36 = math.exp %35 : vector<8x8xf32>
    %cst_21 = arith.constant dense<0.000000e+00> : vector<8xf32>
    %37 = vector.multi_reduction <add>, %36, %cst_21 [1] : vector<8x8xf32> to vector<8xf32>
    %38 = vector.shape_cast %37 : vector<8xf32> to vector<8x1xf32>
    %39 = tpu.reciprocal %38 {approx = true} : vector<8x1xf32> -> vector<8x1xf32>
    %40 = vector.broadcast %39 : vector<8x1xf32> to vector<8x8xf32>
    %41 = arith.mulf %36, %40 : vector<8x8xf32>
    %42 = arith.truncf %41 : vector<8x8xf32> to vector<8x8xbf16>
    %43 = vector.extract_strided_slice %24 {offsets = [0, 0], sizes = [8, 8], strides = [1, 1]} : vector<8x32xbf16> to vector<8x8xbf16>
    %cst_22 = arith.constant dense<0.000000e+00> : vector<8x8xf32>
    %44 = tpu.matmul %42, %43, %cst_22 {dimension_numbers = #tpu.dot_dimension_numbers<[1], [0], [0], [1], [0, 0, 1, 1], [], []>} : vector<8x8xbf16>, vector<8x8xbf16>, vector<8x8xf32> -> vector<8x8xf32>
    %45 = arith.truncf %44 : vector<8x8xf32> to vector<8x8xbf16>
    %46 = vector.extract_strided_slice %25 {offsets = [0, 0], sizes = [8, 32], strides = [1, 1]} : vector<32x32xbf16> to vector<8x32xbf16>
    %cst_23 = arith.constant dense<0.000000e+00> : vector<8x32xf32>
    %47 = tpu.matmul %45, %46, %cst_23 {dimension_numbers = #tpu.dot_dimension_numbers<[1], [0], [0], [1], [0, 0, 1, 1], [], []>} : vector<8x8xbf16>, vector<8x32xbf16>, vector<8x32xf32> -> vector<8x32xf32>
    %48 = arith.addf %27, %47 : vector<8x32xf32>
    %49 = vector.extract_strided_slice %20 {offsets = [0, 8], sizes = [8, 8], strides = [1, 1]} : vector<8x32xbf16> to vector<8x8xbf16>
    %50 = vector.extract_strided_slice %22 {offsets = [0, 8], sizes = [8, 8], strides = [1, 1]} : vector<8x32xbf16> to vector<8x8xbf16>
    %cst_24 = arith.constant dense<0.000000e+00> : vector<8x8xf32>
    %51 = tpu.matmul %49, %50, %cst_24 {dimension_numbers = #tpu.dot_dimension_numbers<[1], [1], [0], [0], [0, 0, 1, 0], [], []>} : vector<8x8xbf16>, vector<8x8xbf16>, vector<8x8xf32> -> vector<8x8xf32>
    %52 = arith.addf %51, %3 : vector<8x8xf32>
    %cst_25 = arith.constant dense<0xFF800000> : vector<8xf32>
    %53 = vector.multi_reduction <maximumf>, %52, %cst_25 [1] : vector<8x8xf32> to vector<8xf32>
    %54 = vector.shape_cast %53 : vector<8xf32> to vector<8x1xf32>
    %55 = vector.broadcast %54 : vector<8x1xf32> to vector<8x8xf32>
    %56 = arith.subf %52, %55 : vector<8x8xf32>
    %57 = math.exp %56 : vector<8x8xf32>
    %cst_26 = arith.constant dense<0.000000e+00> : vector<8xf32>
    %58 = vector.multi_reduction <add>, %57, %cst_26 [1] : vector<8x8xf32> to vector<8xf32>
    %59 = vector.shape_cast %58 : vector<8xf32> to vector<8x1xf32>
    %60 = tpu.reciprocal %59 {approx = true} : vector<8x1xf32> -> vector<8x1xf32>
    %61 = vector.broadcast %60 : vector<8x1xf32> to vector<8x8xf32>
    %62 = arith.mulf %57, %61 : vector<8x8xf32>
    %63 = arith.truncf %62 : vector<8x8xf32> to vector<8x8xbf16>
    %64 = vector.extract_strided_slice %24 {offsets = [0, 8], sizes = [8, 8], strides = [1, 1]} : vector<8x32xbf16> to vector<8x8xbf16>
    %cst_27 = arith.constant dense<0.000000e+00> : vector<8x8xf32>
    %65 = tpu.matmul %63, %64, %cst_27 {dimension_numbers = #tpu.dot_dimension_numbers<[1], [0], [0], [1], [0, 0, 1, 1], [], []>} : vector<8x8xbf16>, vector<8x8xbf16>, vector<8x8xf32> -> vector<8x8xf32>
    %66 = arith.truncf %65 : vector<8x8xf32> to vector<8x8xbf16>
    %67 = vector.extract_strided_slice %25 {offsets = [8, 0], sizes = [8, 32], strides = [1, 1]} : vector<32x32xbf16> to vector<8x32xbf16>
    %cst_28 = arith.constant dense<0.000000e+00> : vector<8x32xf32>
    %68 = tpu.matmul %66, %67, %cst_28 {dimension_numbers = #tpu.dot_dimension_numbers<[1], [0], [0], [1], [0, 0, 1, 1], [], []>} : vector<8x8xbf16>, vector<8x32xbf16>, vector<8x32xf32> -> vector<8x32xf32>
    %69 = arith.addf %48, %68 : vector<8x32xf32>
    %70 = vector.extract_strided_slice %20 {offsets = [0, 16], sizes = [8, 8], strides = [1, 1]} : vector<8x32xbf16> to vector<8x8xbf16>
    %71 = vector.extract_strided_slice %22 {offsets = [0, 16], sizes = [8, 8], strides = [1, 1]} : vector<8x32xbf16> to vector<8x8xbf16>
    %cst_29 = arith.constant dense<0.000000e+00> : vector<8x8xf32>
    %72 = tpu.matmul %70, %71, %cst_29 {dimension_numbers = #tpu.dot_dimension_numbers<[1], [1], [0], [0], [0, 0, 1, 0], [], []>} : vector<8x8xbf16>, vector<8x8xbf16>, vector<8x8xf32> -> vector<8x8xf32>
    %73 = arith.addf %72, %3 : vector<8x8xf32>
    %cst_30 = arith.constant dense<0xFF800000> : vector<8xf32>
    %74 = vector.multi_reduction <maximumf>, %73, %cst_30 [1] : vector<8x8xf32> to vector<8xf32>
    %75 = vector.shape_cast %74 : vector<8xf32> to vector<8x1xf32>
    %76 = vector.broadcast %75 : vector<8x1xf32> to vector<8x8xf32>
    %77 = arith.subf %73, %76 : vector<8x8xf32>
    %78 = math.exp %77 : vector<8x8xf32>
    %cst_31 = arith.constant dense<0.000000e+00> : vector<8xf32>
    %79 = vector.multi_reduction <add>, %78, %cst_31 [1] : vector<8x8xf32> to vector<8xf32>
    %80 = vector.shape_cast %79 : vector<8xf32> to vector<8x1xf32>
    %81 = tpu.reciprocal %80 {approx = true} : vector<8x1xf32> -> vector<8x1xf32>
    %82 = vector.broadcast %81 : vector<8x1xf32> to vector<8x8xf32>
    %83 = arith.mulf %78, %82 : vector<8x8xf32>
    %84 = arith.truncf %83 : vector<8x8xf32> to vector<8x8xbf16>
    %85 = vector.extract_strided_slice %24 {offsets = [0, 16], sizes = [8, 8], strides = [1, 1]} : vector<8x32xbf16> to vector<8x8xbf16>
    %cst_32 = arith.constant dense<0.000000e+00> : vector<8x8xf32>
    %86 = tpu.matmul %84, %85, %cst_32 {dimension_numbers = #tpu.dot_dimension_numbers<[1], [0], [0], [1], [0, 0, 1, 1], [], []>} : vector<8x8xbf16>, vector<8x8xbf16>, vector<8x8xf32> -> vector<8x8xf32>
    %87 = arith.truncf %86 : vector<8x8xf32> to vector<8x8xbf16>
    %88 = vector.extract_strided_slice %25 {offsets = [16, 0], sizes = [8, 32], strides = [1, 1]} : vector<32x32xbf16> to vector<8x32xbf16>
    %cst_33 = arith.constant dense<0.000000e+00> : vector<8x32xf32>
    %89 = tpu.matmul %87, %88, %cst_33 {dimension_numbers = #tpu.dot_dimension_numbers<[1], [0], [0], [1], [0, 0, 1, 1], [], []>} : vector<8x8xbf16>, vector<8x32xbf16>, vector<8x32xf32> -> vector<8x32xf32>
    %90 = arith.addf %69, %89 : vector<8x32xf32>
    %91 = vector.extract_strided_slice %20 {offsets = [0, 24], sizes = [8, 8], strides = [1, 1]} : vector<8x32xbf16> to vector<8x8xbf16>
    %92 = vector.extract_strided_slice %22 {offsets = [0, 24], sizes = [8, 8], strides = [1, 1]} : vector<8x32xbf16> to vector<8x8xbf16>
    %cst_34 = arith.constant dense<0.000000e+00> : vector<8x8xf32>
    %93 = tpu.matmul %91, %92, %cst_34 {dimension_numbers = #tpu.dot_dimension_numbers<[1], [1], [0], [0], [0, 0, 1, 0], [], []>} : vector<8x8xbf16>, vector<8x8xbf16>, vector<8x8xf32> -> vector<8x8xf32>
    %94 = arith.addf %93, %3 : vector<8x8xf32>
    %cst_35 = arith.constant dense<0xFF800000> : vector<8xf32>
    %95 = vector.multi_reduction <maximumf>, %94, %cst_35 [1] : vector<8x8xf32> to vector<8xf32>
    %96 = vector.shape_cast %95 : vector<8xf32> to vector<8x1xf32>
    %97 = vector.broadcast %96 : vector<8x1xf32> to vector<8x8xf32>
    %98 = arith.subf %94, %97 : vector<8x8xf32>
    %99 = math.exp %98 : vector<8x8xf32>
    %cst_36 = arith.constant dense<0.000000e+00> : vector<8xf32>
    %100 = vector.multi_reduction <add>, %99, %cst_36 [1] : vector<8x8xf32> to vector<8xf32>
    %101 = vector.shape_cast %100 : vector<8xf32> to vector<8x1xf32>
    %102 = tpu.reciprocal %101 {approx = true} : vector<8x1xf32> -> vector<8x1xf32>
    %103 = vector.broadcast %102 : vector<8x1xf32> to vector<8x8xf32>
    %104 = arith.mulf %99, %103 : vector<8x8xf32>
    %105 = arith.truncf %104 : vector<8x8xf32> to vector<8x8xbf16>
    %106 = vector.extract_strided_slice %24 {offsets = [0, 24], sizes = [8, 8], strides = [1, 1]} : vector<8x32xbf16> to vector<8x8xbf16>
    %cst_37 = arith.constant dense<0.000000e+00> : vector<8x8xf32>
    %107 = tpu.matmul %105, %106, %cst_37 {dimension_numbers = #tpu.dot_dimension_numbers<[1], [0], [0], [1], [0, 0, 1, 1], [], []>} : vector<8x8xbf16>, vector<8x8xbf16>, vector<8x8xf32> -> vector<8x8xf32>
    %108 = arith.truncf %107 : vector<8x8xf32> to vector<8x8xbf16>
    %109 = vector.extract_strided_slice %25 {offsets = [24, 0], sizes = [8, 32], strides = [1, 1]} : vector<32x32xbf16> to vector<8x32xbf16>
    %cst_38 = arith.constant dense<0.000000e+00> : vector<8x32xf32>
    %110 = tpu.matmul %108, %109, %cst_38 {dimension_numbers = #tpu.dot_dimension_numbers<[1], [0], [0], [1], [0, 0, 1, 1], [], []>} : vector<8x8xbf16>, vector<8x32xbf16>, vector<8x32xf32> -> vector<8x32xf32>
    %111 = arith.addf %90, %110 : vector<8x32xf32>
    %112 = arith.addf %1, %111 : vector<8x32xf32>
    %cst_39 = arith.constant dense<0.000000e+00> : vector<8xf32>
    %113 = vector.multi_reduction <add>, %112, %cst_39 [1] : vector<8x32xf32> to vector<8xf32>
    %114 = vector.shape_cast %113 : vector<8xf32> to vector<8x1xf32>
    %cst_40 = arith.constant 3.200000e+01 : f32
    %115 = vector.broadcast %cst_40 : f32 to vector<8x1xf32>
    %116 = arith.divf %114, %115 : vector<8x1xf32>
    %117 = vector.broadcast %116 : vector<8x1xf32> to vector<8x32xf32>
    %118 = arith.subf %112, %117 : vector<8x32xf32>
    %119 = arith.mulf %118, %118 : vector<8x32xf32>
    %cst_41 = arith.constant dense<0.000000e+00> : vector<8xf32>
    %120 = vector.multi_reduction <add>, %119, %cst_41 [1] : vector<8x32xf32> to vector<8xf32>
    %121 = vector.shape_cast %120 : vector<8xf32> to vector<8x1xf32>
    %cst_42 = arith.constant 3.200000e+01 : f32
    %122 = vector.broadcast %cst_42 : f32 to vector<8x1xf32>
    %123 = arith.divf %121, %122 : vector<8x1xf32>
    %124 = vector.broadcast %116 : vector<8x1xf32> to vector<8x32xf32>
    %125 = arith.subf %112, %124 : vector<8x32xf32>
    %cst_43 = arith.constant 9.99999974E-6 : f32
    %126 = vector.broadcast %cst_43 : f32 to vector<8x1xf32>
    %127 = arith.addf %123, %126 : vector<8x1xf32>
    %128 = math.rsqrt %127 : vector<8x1xf32>
    %129 = vector.broadcast %128 : vector<8x1xf32> to vector<8x32xf32>
    %130 = arith.mulf %125, %129 : vector<8x32xf32>
    %131 = vector.broadcast %8 : vector<1x32xf32> to vector<8x32xf32>
    %132 = arith.mulf %130, %131 : vector<8x32xf32>
    %133 = vector.broadcast %9 : vector<1x32xf32> to vector<8x32xf32>
    %134 = arith.addf %132, %133 : vector<8x32xf32>
    %135 = arith.truncf %134 : vector<8x32xf32> to vector<8x32xbf16>
    %c0_44 = arith.constant 0 : index
    %c0_45 = arith.constant 0 : index
    %136 = vector.load %arg5[%c0_44, %c0_45] : memref<32x64xbf16, #tpu.memory_space<vmem>>, vector<32x64xbf16>
    %cst_46 = arith.constant dense<0.000000e+00> : vector<8x64xf32>
    %137 = tpu.matmul %135, %136, %cst_46 {dimension_numbers = #tpu.dot_dimension_numbers<[1], [0], [0], [1], [0, 0, 1, 1], [], []>} : vector<8x32xbf16>, vector<32x64xbf16>, vector<8x64xf32> -> vector<8x64xf32>
    %138 = vector.broadcast %6 : vector<1x64xf32> to vector<8x64xf32>
    %139 = arith.addf %137, %138 : vector<8x64xf32>
    %cst_47 = arith.constant 5.000000e-01 : f32
    %140 = vector.broadcast %cst_47 : f32 to vector<8x64xf32>
    %141 = arith.mulf %140, %139 : vector<8x64xf32>
    %cst_48 = arith.constant 4.471500e-02 : f32
    %142 = vector.broadcast %cst_48 : f32 to vector<8x64xf32>
    %143 = arith.mulf %142, %139 : vector<8x64xf32>
    %144 = arith.mulf %143, %139 : vector<8x64xf32>
    %145 = arith.mulf %144, %139 : vector<8x64xf32>
    %146 = arith.addf %139, %145 : vector<8x64xf32>
    %cst_49 = arith.constant 0.797884583 : f32
    %147 = vector.broadcast %cst_49 : f32 to vector<8x64xf32>
    %148 = arith.mulf %147, %146 : vector<8x64xf32>
    %149 = math.tanh %148 : vector<8x64xf32>
    %cst_50 = arith.constant 1.000000e+00 : f32
    %150 = vector.broadcast %cst_50 : f32 to vector<8x64xf32>
    %151 = arith.addf %150, %149 : vector<8x64xf32>
    %152 = arith.mulf %141, %151 : vector<8x64xf32>
    %153 = arith.truncf %152 : vector<8x64xf32> to vector<8x64xbf16>
    %c0_51 = arith.constant 0 : index
    %c0_52 = arith.constant 0 : index
    %154 = vector.load %arg6[%c0_51, %c0_52] : memref<64x32xbf16, #tpu.memory_space<vmem>>, vector<64x32xbf16>
    %cst_53 = arith.constant dense<0.000000e+00> : vector<8x32xf32>
    %155 = tpu.matmul %153, %154, %cst_53 {dimension_numbers = #tpu.dot_dimension_numbers<[1], [0], [0], [1], [0, 0, 1, 1], [], []>} : vector<8x64xbf16>, vector<64x32xbf16>, vector<8x32xf32> -> vector<8x32xf32>
    %156 = vector.broadcast %7 : vector<1x32xf32> to vector<8x32xf32>
    %157 = arith.addf %155, %156 : vector<8x32xf32>
    %158 = arith.addf %134, %157 : vector<8x32xf32>
    %cst_54 = arith.constant dense<0.000000e+00> : vector<8xf32>
    %159 = vector.multi_reduction <add>, %158, %cst_54 [1] : vector<8x32xf32> to vector<8xf32>
    %160 = vector.shape_cast %159 : vector<8xf32> to vector<8x1xf32>
    %cst_55 = arith.constant 3.200000e+01 : f32
    %161 = vector.broadcast %cst_55 : f32 to vector<8x1xf32>
    %162 = arith.divf %160, %161 : vector<8x1xf32>
    %163 = vector.broadcast %162 : vector<8x1xf32> to vector<8x32xf32>
    %164 = arith.subf %158, %163 : vector<8x32xf32>
    %165 = arith.mulf %164, %164 : vector<8x32xf32>
    %cst_56 = arith.constant dense<0.000000e+00> : vector<8xf32>
    %166 = vector.multi_reduction <add>, %165, %cst_56 [1] : vector<8x32xf32> to vector<8xf32>
    %167 = vector.shape_cast %166 : vector<8xf32> to vector<8x1xf32>
    %cst_57 = arith.constant 3.200000e+01 : f32
    %168 = vector.broadcast %cst_57 : f32 to vector<8x1xf32>
    %169 = arith.divf %167, %168 : vector<8x1xf32>
    %170 = vector.broadcast %162 : vector<8x1xf32> to vector<8x32xf32>
    %171 = arith.subf %158, %170 : vector<8x32xf32>
    %cst_58 = arith.constant 9.99999974E-6 : f32
    %172 = vector.broadcast %cst_58 : f32 to vector<8x1xf32>
    %173 = arith.addf %169, %172 : vector<8x1xf32>
    %174 = math.rsqrt %173 : vector<8x1xf32>
    %175 = vector.broadcast %174 : vector<8x1xf32> to vector<8x32xf32>
    %176 = arith.mulf %171, %175 : vector<8x32xf32>
    %177 = vector.broadcast %10 : vector<1x32xf32> to vector<8x32xf32>
    %178 = arith.mulf %176, %177 : vector<8x32xf32>
    %179 = vector.broadcast %11 : vector<1x32xf32> to vector<8x32xf32>
    %180 = arith.addf %178, %179 : vector<8x32xf32>
    %c0_59 = arith.constant 0 : index
    %c0_60 = arith.constant 0 : index
    %c0_61 = arith.constant 0 : index
    %181 = vector.load %arg8[%c0_59, %c0_60, %c0_61] : memref<1x8x32xf32, #tpu.memory_space<vmem>>, vector<1x8x32xf32>
    %182 = vector.shape_cast %181 : vector<1x8x32xf32> to vector<8x32xf32>
    %183 = vector.shape_cast %180 : vector<8x32xf32> to vector<1x8x32xf32>
    tpu.vector_store %arg8[%c0_59, %c0_60, %c0_61], %183 {strides = array<i32>} : memref<1x8x32xf32, #tpu.memory_space<vmem>>, vector<1x8x32xf32>,
    return
  }
  func.func @transform_0(%arg0: i32) -> (i32, i32, i32) {
    %c0_i32 = arith.constant 0 : i32
    %c0_i32_0 = arith.constant 0 : i32
    %c0_i32_1 = arith.constant 0 : i32
    return %arg0, %c0_i32, %c0_i32_0 : i32, i32, i32
  }
  func.func @transform_1(%arg0: i32) -> (i32, i32, i32) {
    %c0_i32 = arith.constant 0 : i32
    %c0_i32_0 = arith.constant 0 : i32
    %c0_i32_1 = arith.constant 0 : i32
    return %arg0, %c0_i32, %c0_i32_0 : i32, i32, i32
  }
  func.func @transform_2(%arg0: i32) -> (i32, i32) {
    %c0_i32 = arith.constant 0 : i32
    %c0_i32_0 = arith.constant 0 : i32
    %c0_i32_1 = arith.constant 0 : i32
    return %c0_i32, %c0_i32_0 : i32, i32
  }
  func.func @transform_3(%arg0: i32) -> (i32, i32) {
    %c0_i32 = arith.constant 0 : i32
    %c0_i32_0 = arith.constant 0 : i32
    %c0_i32_1 = arith.constant 0 : i32
    return %c0_i32, %c0_i32_0 : i32, i32
  }
  func.func @transform_4(%arg0: i32) -> (i32, i32) {
    %c0_i32 = arith.constant 0 : i32
    %c0_i32_0 = arith.constant 0 : i32
    %c0_i32_1 = arith.constant 0 : i32
    return %c0_i32, %c0_i32_0 : i32, i32
  }
  func.func @transform_5(%arg0: i32) -> (i32, i32) {
    %c0_i32 = arith.constant 0 : i32
    %c0_i32_0 = arith.constant 0 : i32
    %c0_i32_1 = arith.constant 0 : i32
    return %c0_i32, %c0_i32_0 : i32, i32
  }
  func.func @transform_6(%arg0: i32) -> (i32, i32) {
    %c0_i32 = arith.constant 0 : i32
    %c0_i32_0 = arith.constant 0 : i32
    %c0_i32_1 = arith.constant 0 : i32
    return %c0_i32, %c0_i32_0 : i32, i32
  }
  func.func @transform_7(%arg0: i32) -> (i32, i32, i32) {
    %c0_i32 = arith.constant 0 : i32
    %c0_i32_0 = arith.constant 0 : i32
    %c0_i32_1 = arith.constant 0 : i32
    return %arg0, %c0_i32, %c0_i32_0 : i32, i32, i32
  }
}

</mosaic_0001>

<llo_original>
// kernel: bart_encoder_layer.1
$region0: #{bart_encoder_layer.1}
  #allocation0 [shape = 'u32[]', space=smem, size = 0x4, offset = 0x4, fixed_abs, tag = 'smem constant byte address 0x4 - core index']
  #allocation1 [shape = 'u32[144,128]{1,0:T(1,128)}', space=vmem, size = 0x12000, scoped, tag = 'internal scratch']
  %s0 = inlined_call_operand.vmem [shape: f32[2,8,32], index: 0, kind: input, shape index: {}]
  %s1 = inlined_call_operand.vmem [shape: f32[2,8,8], index: 1, kind: input, shape index: {}]
  %s2 = inlined_call_operand.vmem [shape: bf16[32,96], index: 2, kind: input, shape index: {}]
  %s3 = inlined_call_operand.hbm [shape: bf16[32,32], index: 3, kind: input, shape index: {}]
  %s4 = inlined_call_operand.hbm [shape: bf16[32,64], index: 4, kind: input, shape index: {}]
  %s5 = inlined_call_operand.vmem [shape: bf16[64,32], index: 5, kind: input, shape index: {}]
  %s6 = inlined_call_operand.hbm [shape: f32[8,96], index: 6, kind: input, shape index: {}]
  %s7 = inlined_call_operand.hbm [shape: f32[2,8,32], index: 7, kind: output, shape index: {}]
  %s8 = sld [smem:[#allocation0]]
  $region73: #{bart_encoder_layer.1} parent=0
    _
  %s10 = ssub.s32 1, %s8
  %s11 = scalar_select 0, %s10, %s8
  $region1: #{bart_encoder_layer.1} parent=0
    #allocation2 [shape = 'u8[8192]{0}', space=vmem, size = 0x2000, scoped, tag = 'input window, operand 3, single buffered']
    #allocation3 [shape = 's32[2]{0}', space=sflag, size = 0x8, scoped, tag = 'scoped memory for bart_encoder_layer.1']
    #allocation4 [shape = 's32[2]{0}', space=sflag, size = 0x8, scoped, tag = 'scoped memory for bart_encoder_layer.1']
    #allocation5 [shape = 'u8[8192]{0}', space=vmem, size = 0x2000, scoped, tag = 'input window, operand 4, single buffered']
    #allocation6 [shape = 's32[1]{0}', space=sflag, size = 0x4, scoped, tag = 'scoped memory for bart_encoder_layer.1']
    #allocation7 [shape = 'u8[4096]{0}', space=vmem, size = 0x1000, scoped, tag = 'input window, operand 6, single buffered']
    #allocation8 [shape = 'u8[8192]{0}', space=vmem, size = 0x2000, scoped, tag = 'output window, operand 0']
    %12 = vsyncpa [#allocation3], 0
    %13 = vsyncpa [#allocation6], 0
    %14 = vsyncpa [#allocation4], 0
    %s15 = scalar_lea.sflag [#allocation4], 1
    %16 = vsyncpa %s15, 0
    loop: start=0, step=1, limit=4
    $region2: #{bart_encoder_layer.1} parent=1 // loop_pre_header
      _
    $region3: #{bart_encoder_layer.1} parent=1 // loop_header
      %s18 = sphi 0, %s22
      %p19 = scmp.ge.s32.totalorder %s18, 4
      %s28 = sphi 0, %s30
      %s31 = sphi 0, %s28
      %s32 = sphi 0, %s31
      %s48 = sphi 0, %s32
      %s54 = sphi 0, %s56
      %s57 = sphi 0, %s54
      %s58 = sphi 0, %s57
      %s74 = sphi 0, %s58
      %s78 = sphi 0, %s78
      %s80 = sphi 0, %s78
      %s81 = sphi 0, %s80
      %s95 = sphi 0, %s81
      %s99 = sphi 0, %s99
      %s101 = sphi 0, %s99
      %s102 = sphi 0, %s101
      %s116 = sphi 0, %s102
      %s120 = sphi 0, %s120
      %s122 = sphi 0, %s120
      %s123 = sphi 0, %s122
      %s137 = sphi 0, %s123
      %s141 = sphi 0, %s141
      %s143 = sphi 0, %s141
      %s144 = sphi 0, %s143
      %s158 = sphi 0, %s144
      %s162 = sphi 0, %s162
      %s164 = sphi 0, %s162
      %s165 = sphi 0, %s164
      %s179 = sphi 0, %s165
      %s185 = sphi 0, %s187
      %s188 = sphi 0, %s185
      %s189 = sphi 0, %s188
      %s205 = sphi 0, %s189
    $region4: #{bart_encoder_layer.1} parent=1 // loop_header_branch
      %21 = sbr.rel (%p19) target = $region8
    $region5: #{bart_encoder_layer.1} parent=1 // loop_body
      %s23 = ssub.s32 %s18, 1
      %s24 = ssub.s32 %s18, 2
      %s25 = sadd.s32 %s18, 1
      %s26 = ssub.s32 %s18, %s25
      %p27 = scmp.eq.s32.totalorder %s26, 0
      %s29 = sadd.s32 %s28, 1
      %s30 = scalar_select %p27, %s28, %s29
      %p33 = pneg %p27
      %p34 = scmp.eq.s32.totalorder %s18, 1
      %p35 = por %p33, %p34
      %p36 = scmp.ne.s32.totalorder %s28, %s31
      %p37 = scmp.eq.s32.totalorder %s18, 0
      %p38 = por %p36, %p37
      %p39 = scmp.ne.s32.totalorder %s28, %s31
      %p40 = scmp.eq.s32.totalorder %s23, 1
      %p41 = por %p39, %p40
      %p42 = scmp.ne.s32.totalorder %s31, %s32
      %p43 = scmp.eq.s32.totalorder %s23, 0
      %p44 = por %p42, %p43
      %p45 = scmp.ne.s32.totalorder %s31, %s32
      %p46 = scmp.eq.s32.totalorder %s24, 1
      %p47 = por %p45, %p46
      %p49 = scmp.ne.s32.totalorder %s32, %s48
      %p50 = scmp.eq.s32.totalorder %s24, 0
      %p51 = por %p49, %p50
      %s52 = ssub.s32 %s18, %s25
      %p53 = scmp.eq.s32.totalorder %s52, 0
      %s55 = sadd.s32 %s54, 1
      %s56 = scalar_select %p53, %s54, %s55
      %p59 = pneg %p53
      %p60 = scmp.eq.s32.totalorder %s18, 1
      %p61 = por %p59, %p60
      %p62 = scmp.ne.s32.totalorder %s54, %s57
      %p63 = scmp.eq.s32.totalorder %s18, 0
      %p64 = por %p62, %p63
      %p65 = scmp.ne.s32.totalorder %s54, %s57
      %p66 = scmp.eq.s32.totalorder %s23, 1
      %p67 = por %p65, %p66
      %p68 = scmp.ne.s32.totalorder %s57, %s58
      %p69 = scmp.eq.s32.totalorder %s23, 0
      %p70 = por %p68, %p69
      %p71 = scmp.ne.s32.totalorder %s57, %s58
      %p72 = scmp.eq.s32.totalorder %s24, 1
      %p73 = por %p71, %p72
      %p75 = scmp.ne.s32.totalorder %s58, %s74
      %p76 = scmp.eq.s32.totalorder %s24, 0
      %p77 = por %p75, %p76
      %s79 = sadd.s32 %s78, 1
      %p82 = scmp.eq.s32.totalorder %s18, 1
      %p83 = scmp.ne.s32.totalorder %s78, %s80
      %p84 = scmp.eq.s32.totalorder %s18, 0
      %p85 = por %p83, %p84
      %p86 = scmp.ne.s32.totalorder %s78, %s80
      %p87 = scmp.eq.s32.totalorder %s23, 1
      %p88 = por %p86, %p87
      %p89 = scmp.ne.s32.totalorder %s80, %s81
      %p90 = scmp.eq.s32.totalorder %s23, 0
      %p91 = por %p89, %p90
      %p92 = scmp.ne.s32.totalorder %s80, %s81
      %p93 = scmp.eq.s32.totalorder %s24, 1
      %p94 = por %p92, %p93
      %p96 = scmp.ne.s32.totalorder %s81, %s95
      %p97 = scmp.eq.s32.totalorder %s24, 0
      %p98 = por %p96, %p97
      %s100 = sadd.s32 %s99, 1
      %p103 = scmp.eq.s32.totalorder %s18, 1
      %p104 = scmp.ne.s32.totalorder %s99, %s101
      %p105 = scmp.eq.s32.totalorder %s18, 0
      %p106 = por %p104, %p105
      %p107 = scmp.ne.s32.totalorder %s99, %s101
      %p108 = scmp.eq.s32.totalorder %s23, 1
      %p109 = por %p107, %p108
      %p110 = scmp.ne.s32.totalorder %s101, %s102
      %p111 = scmp.eq.s32.totalorder %s23, 0
      %p112 = por %p110, %p111
      %p113 = scmp.ne.s32.totalorder %s101, %s102
      %p114 = scmp.eq.s32.totalorder %s24, 1
      %p115 = por %p113, %p114
      %p117 = scmp.ne.s32.totalorder %s102, %s116
      %p118 = scmp.eq.s32.totalorder %s24, 0
      %p119 = por %p117, %p118
      %s121 = sadd.s32 %s120, 1
      %p124 = scmp.eq.s32.totalorder %s18, 1
      %p125 = scmp.ne.s32.totalorder %s120, %s122
      %p126 = scmp.eq.s32.totalorder %s18, 0
      %p127 = por %p125, %p126
      %p128 = scmp.ne.s32.totalorder %s120, %s122
      %p129 = scmp.eq.s32.totalorder %s23, 1
      %p130 = por %p128, %p129
      %p131 = scmp.ne.s32.totalorder %s122, %s123
      %p132 = scmp.eq.s32.totalorder %s23, 0
      %p133 = por %p131, %p132
      %p134 = scmp.ne.s32.totalorder %s122, %s123
      %p135 = scmp.eq.s32.totalorder %s24, 1
      %p136 = por %p134, %p135
      %p138 = scmp.ne.s32.totalorder %s123, %s137
      %p139 = scmp.eq.s32.totalorder %s24, 0
      %p140 = por %p138, %p139
      %s142 = sadd.s32 %s141, 1
      %p145 = scmp.eq.s32.totalorder %s18, 1
      %p146 = scmp.ne.s32.totalorder %s141, %s143
      %p147 = scmp.eq.s32.totalorder %s18, 0
      %p148 = por %p146, %p147
      %p149 = scmp.ne.s32.totalorder %s141, %s143
      %p150 = scmp.eq.s32.totalorder %s23, 1
      %p151 = por %p149, %p150
      %p152 = scmp.ne.s32.totalorder %s143, %s144
      %p153 = scmp.eq.s32.totalorder %s23, 0
      %p154 = por %p152, %p153
      %p155 = scmp.ne.s32.totalorder %s143, %s144
      %p156 = scmp.eq.s32.totalorder %s24, 1
      %p157 = por %p155, %p156
      %p159 = scmp.ne.s32.totalorder %s144, %s158
      %p160 = scmp.eq.s32.totalorder %s24, 0
      %p161 = por %p159, %p160
      %s163 = sadd.s32 %s162, 1
      %p166 = scmp.eq.s32.totalorder %s18, 1
      %p167 = scmp.ne.s32.totalorder %s162, %s164
      %p168 = scmp.eq.s32.totalorder %s18, 0
      %p169 = por %p167, %p168
      %p170 = scmp.ne.s32.totalorder %s162, %s164
      %p171 = scmp.eq.s32.totalorder %s23, 1
      %p172 = por %p170, %p171
      %p173 = scmp.ne.s32.totalorder %s164, %s165
      %p174 = scmp.eq.s32.totalorder %s23, 0
      %p175 = por %p173, %p174
      %p176 = scmp.ne.s32.totalorder %s164, %s165
      %p177 = scmp.eq.s32.totalorder %s24, 1
      %p178 = por %p176, %p177
      %p180 = scmp.ne.s32.totalorder %s165, %s179
      %p181 = scmp.eq.s32.totalorder %s24, 0
      %p182 = por %p180, %p181
      %s183 = ssub.s32 %s18, %s25
      %p184 = scmp.eq.s32.totalorder %s183, 0
      %s186 = sadd.s32 %s185, 1
      %s187 = scalar_select %p184, %s185, %s186
      %p190 = pneg %p184
      %p191 = scmp.eq.s32.totalorder %s18, 1
      %p192 = por %p190, %p191
      %p193 = scmp.ne.s32.totalorder %s185, %s188
      %p194 = scmp.eq.s32.totalorder %s18, 0
      %p195 = por %p193, %p194
      %p196 = scmp.ne.s32.totalorder %s185, %s188
      %p197 = scmp.eq.s32.totalorder %s23, 1
      %p198 = por %p196, %p197
      %p199 = scmp.ne.s32.totalorder %s188, %s189
      %p200 = scmp.eq.s32.totalorder %s23, 0
      %p201 = por %p199, %p200
      %p202 = scmp.ne.s32.totalorder %s188, %s189
      %p203 = scmp.eq.s32.totalorder %s24, 1
      %p204 = por %p202, %p203
      %p206 = scmp.ne.s32.totalorder %s189, %s205
      %p207 = scmp.eq.s32.totalorder %s24, 0
      %p208 = por %p206, %p207
      %p209 = scmp.le.s32.totalorder 1, %s18
      %p210 = scmp.lt.s32.totalorder %s18, 3
      %p211 = pnand %p209, %p210
      %p212 = pneg %p211
      // Predicated region
      $region9: #{bart_encoder_layer.1} parent=5 // pred_check
        _
      $region10: #{bart_encoder_layer.1} parent=5 // pred_check_branch
        %214 = sbr.rel (%p211) target = $region12
      $region11: #{bart_encoder_layer.1} parent=5 // pred_region
        %s215 = ssub.s32 %s18, 1
        // Predicated region
        $region13: #{bart_encoder_layer.1} parent=11 // pred_check
          %p216 = pneg %p91
        $region14: #{bart_encoder_layer.1} parent=11 // pred_check_branch
          %218 = sbr.rel (%p216) target = $region16
        $region15: #{bart_encoder_layer.1} parent=11 // pred_region
          _
        $region16: #{bart_encoder_layer.1} parent=11 // pred_fallthru
          _
        // Predicated region
        $region17: #{bart_encoder_layer.1} parent=11 // pred_check
          %p219 = pneg %p112
        $region18: #{bart_encoder_layer.1} parent=11 // pred_check_branch
          %221 = sbr.rel (%p219) target = $region20
        $region19: #{bart_encoder_layer.1} parent=11 // pred_region
          %s223 = ssub.s32 256, 256
          %224 = vsyncadd [#allocation3], %s223
          %s225 = sshll.u32 [#allocation2], 4
          %s226 = int_to_ptr.vmem [resolvable:$true] %s225
          %231 = dma.hbm_to_vmem [thread:$0]  %s3, 256, %s226, [#allocation3], 64, 64, 4
        $region20: #{bart_encoder_layer.1} parent=11 // pred_fallthru
          _
        // Predicated region
        $region21: #{bart_encoder_layer.1} parent=11 // pred_check
          %p232 = pneg %p133
        $region22: #{bart_encoder_layer.1} parent=11 // pred_check_branch
          %234 = sbr.rel (%p232) target = $region24
        $region23: #{bart_encoder_layer.1} parent=11 // pred_region
          %s236 = ssub.s32 256, 256
          %237 = vsyncadd [#allocation6], %s236
          %s238 = sshll.u32 [#allocation5], 4
          %s239 = int_to_ptr.vmem [resolvable:$true] %s238
          %244 = dma.hbm_to_vmem [thread:$0]  %s4, 256, %s239, [#allocation6], 64, 64, 4
        $region24: #{bart_encoder_layer.1} parent=11 // pred_fallthru
          _
        // Predicated region
        $region25: #{bart_encoder_layer.1} parent=11 // pred_check
          %p245 = pneg %p154
        $region26: #{bart_encoder_layer.1} parent=11 // pred_check_branch
          %247 = sbr.rel (%p245) target = $region28
        $region27: #{bart_encoder_layer.1} parent=11 // pred_region
          _
        $region28: #{bart_encoder_layer.1} parent=11 // pred_fallthru
          _
        // Predicated region
        $region29: #{bart_encoder_layer.1} parent=11 // pred_check
          %p248 = pneg %p175
        $region30: #{bart_encoder_layer.1} parent=11 // pred_check_branch
          %250 = sbr.rel (%p248) target = $region32
        $region31: #{bart_encoder_layer.1} parent=11 // pred_region
          %s252 = ssub.s32 128, 128
          %253 = vsyncadd [#allocation6], %s252
          %s255 = sshll.u32 [#allocation7], 4
          %s256 = int_to_ptr.vmem [resolvable:$true] %s255
          %258 = dma.hbm_to_vmem [thread:$0]  %s6, 128, %s256, [#allocation6]
        $region32: #{bart_encoder_layer.1} parent=11 // pred_fallthru
          _
      $region12: #{bart_encoder_layer.1} parent=5 // pred_fallthru
        _
      %p259 = scmp.lt.s32.totalorder %s18, 2
      // Predicated region
      $region33: #{bart_encoder_layer.1} parent=5 // pred_check
        %p260 = pneg %p259
      $region34: #{bart_encoder_layer.1} parent=5 // pred_check_branch
        %262 = sbr.rel (%p260) target = $region36
      $region35: #{bart_encoder_layer.1} parent=5 // pred_region
        // Predicated region
        $region37: #{bart_encoder_layer.1} parent=35 // pred_check
          %p263 = pneg %p38
        $region38: #{bart_encoder_layer.1} parent=35 // pred_check_branch
          %265 = sbr.rel (%p263) target = $region40
        $region39: #{bart_encoder_layer.1} parent=35 // pred_region
          %p266 = scmp.lt.s32.totalorder %s18, 1
          %s267 = scalar_select %p266, %s18, 1
          %s268 = smul.addr %s267, 8
          %s269 = scalar_lea.vmem %s0, %s268
        $region40: #{bart_encoder_layer.1} parent=35 // pred_fallthru
          _
        // Predicated region
        $region41: #{bart_encoder_layer.1} parent=35 // pred_check
          %p270 = pneg %p64
        $region42: #{bart_encoder_layer.1} parent=35 // pred_check_branch
          %272 = sbr.rel (%p270) target = $region44
        $region43: #{bart_encoder_layer.1} parent=35 // pred_region
          %p273 = scmp.lt.s32.totalorder %s18, 1
          %s274 = scalar_select %p273, %s18, 1
          %s275 = smul.addr %s274, 8
          %s276 = scalar_lea.vmem %s1, %s275
        $region44: #{bart_encoder_layer.1} parent=35 // pred_fallthru
          _
      $region36: #{bart_encoder_layer.1} parent=5 // pred_fallthru
        _
      %p277 = scmp.le.s32.totalorder 1, %s18
      %p278 = scmp.lt.s32.totalorder %s18, 3
      %p279 = pnand %p277, %p278
      %p280 = pneg %p279
      // Predicated region
      $region45: #{bart_encoder_layer.1} parent=5 // pred_check
        _
      $region46: #{bart_encoder_layer.1} parent=5 // pred_check_branch
        %282 = sbr.rel (%p279) target = $region48
      $region47: #{bart_encoder_layer.1} parent=5 // pred_region
        %s283 = ssub.s32 %s18, 1
        // Predicated region
        $region49: #{bart_encoder_layer.1} parent=47 // pred_check
          %p284 = pneg %p112
        $region50: #{bart_encoder_layer.1} parent=47 // pred_check_branch
          %286 = sbr.rel (%p284) target = $region52
        $region51: #{bart_encoder_layer.1} parent=47 // pred_region
          %287 = dma.done [#allocation3], 256
        $region52: #{bart_encoder_layer.1} parent=47 // pred_fallthru
          _
        // Predicated region
        $region53: #{bart_encoder_layer.1} parent=47 // pred_check
          %p288 = pneg %p133
        $region54: #{bart_encoder_layer.1} parent=47 // pred_check_branch
          %290 = sbr.rel (%p288) target = $region56
        $region55: #{bart_encoder_layer.1} parent=47 // pred_region
          %291 = dma.done [#allocation6], 256
        $region56: #{bart_encoder_layer.1} parent=47 // pred_fallthru
          _
        // Predicated region
        $region57: #{bart_encoder_layer.1} parent=47 // pred_check
          %p292 = pneg %p175
        $region58: #{bart_encoder_layer.1} parent=47 // pred_check_branch
          %294 = sbr.rel (%p292) target = $region60
        $region59: #{bart_encoder_layer.1} parent=47 // pred_region
          %295 = dma.done [#allocation6], 128
        $region60: #{bart_encoder_layer.1} parent=47 // pred_fallthru
          _
        %p296 = scmp.lt.s32.totalorder %s23, 1
        %s297 = scalar_select %p296, %s23, 1
        %s298 = smul.addr %s297, 8
        %s299 = scalar_lea.vmem %s0, %s298
        %p300 = pneg %p44
        %p301 = pneg %p41
        %p302 = scmp.lt.s32.totalorder %s23, 1
        %s303 = scalar_select %p302, %s23, 1
        %s304 = smul.addr %s303, 8
        %s305 = scalar_lea.vmem %s1, %s304
        %p306 = pneg %p70
        %p307 = pneg %p67
        %p308 = pneg %p91
        %p309 = pneg %p88
        %p310 = pneg %p112
        %p311 = pneg %p109
        %p312 = pneg %p133
        %p313 = pneg %p130
        %p314 = pneg %p154
        %p315 = pneg %p151
        %p316 = pneg %p175
        %p317 = pneg %p172
        %p318 = pneg %p201
        %p319 = pneg %p198
        %s320 = sand.u32 %s188, 1
        %s321 = scalar_lea.sflag [#allocation4], %s320
        %s322 = sand.u32 %s188, 1
        %s323 = smul.addr %s322, 8
        %s324 = scalar_lea.vmem [#allocation8], %s323
        %p325 = scmp.lt.s32.totalorder %s23, 1
        %s326 = scalar_select %p325, %s23, 1
        %s327 = smul.addr %s326, 8
        %s328 = scalar_lea.vmem %s0, %s327
        %p329 = scmp.lt.s32.totalorder %s23, 1
        %s330 = scalar_select %p329, %s23, 1
        %s331 = smul.addr %s330, 8
        %s332 = scalar_lea.vmem %s1, %s331
        %v334 = vld [vmem:[%s328] sm:$0xff]
        %v335 = vld [vmem:[%s332] sm:$0xff]
        %v336 = vld [vmem:[#allocation7] sm:$0x1]
        %v337 = vld [vmem:[#allocation7 + $0x1] sm:$0x1]
        %v338 = vld [vmem:[#allocation7 + $0x2] sm:$0x1]
        %v339 = vld [vmem:[#allocation7 + $0x3] sm:$0x1]
        %v340 = vld [vmem:[#allocation7 + $0x4] sm:$0x1]
        %v341 = vld [vmem:[#allocation7 + $0x5] sm:$0x1]
        %v342 = vld [vmem:[#allocation7 + $0x6] sm:$0x1]
        %v343 = vld [vmem:[#allocation7 + $0x7] sm:$0x1]
        %v344 = vpack.c.bf16 %v334, %v334
        %v345 = vld [vmem:[%s2] sm:$0xf]
        %v346 = vld [vmem:[%s2 + $0x4] sm:$0xf]
        %v347 = vld [vmem:[%s2 + $0x8] sm:$0xf]
        %v348 = vld [vmem:[%s2 + $0xc] sm:$0xf]
        %v349 = vlaneseq
        %v350 = vshrl.u32 %v349, 7
        %v351 = vsub.s32 0, %v350
        %v352 = vrot.slane %v336, %v351
        %v357 = vunpack.c.l.b16 %v345
        %v358 = vunpack.c.l.b16 %v346
        %v359 = vunpack.c.l.b16 %v347
        %v360 = vunpack.c.l.b16 %v348
        %v361 = vpack.c.b16 %v358, %v357
        %v362 = vpack.c.b16 %v360, %v359
        %vm365 = vcmask 261120
        %v367 = vsel %vm365, %v344, 0
        %369 = vmatprep.subr.bf16.mxu0 0
        %370 = vmatpush1.bf16.msra.mxu0 %v361
        %371 = vmatprep.subr.bf16.mxu0 0
        %372 = vmatpush1.bf16.msra.mxu0 %v362
        %373 = vmatprep.subr.bf16.mxu0 0
        %374 = vmatpush1.bf16.msra.mxu0 0
        %375 = vmatprep.subr.bf16.mxu0 0
        %376 = vmatpush1.bf16.msra.mxu0 0
        %377 = vmatprep.subr.bf16.mxu0 0
        %378 = vmatpush1.bf16.msra.mxu0 0
        %379 = vmatprep.subr.bf16.mxu0 0
        %380 = vmatpush1.bf16.msra.mxu0 0
        %381 = vmatprep.subr.bf16.mxu0 0
        %382 = vmatpush1.bf16.msra.mxu0 0
        %383 = vmatprep.subr.bf16.mxu0 0
        %384 = vmatpush1.bf16.msra.mxu0 0
        %385 = vmatprep.subr.bf16.mxu0 0
        %386 = vmatpush1.bf16.msra.mxu0 0
        %387 = vmatprep.subr.bf16.mxu0 0
        %388 = vmatpush1.bf16.msra.mxu0 0
        %389 = vmatprep.subr.bf16.mxu0 0
        %390 = vmatpush1.bf16.msra.mxu0 0
        %391 = vmatprep.subr.bf16.mxu0 0
        %392 = vmatpush1.bf16.msra.mxu0 0
        %393 = vmatprep.subr.bf16.mxu0 0
        %394 = vmatpush1.bf16.msra.mxu0 0
        %395 = vmatprep.subr.bf16.mxu0 0
        %396 = vmatpush1.bf16.msra.mxu0 0
        %397 = vmatprep.subr.bf16.mxu0 0
        %398 = vmatpush1.bf16.msra.mxu0 0
        %399 = vmatprep.subr.bf16.mxu0 0
        %400 = vmatpush1.bf16.msra.mxu0 0
        %401 = vmatprep.mubr.bf16.mxu0 0
        %402 = vmatmul.mubr.bf16.gmra.mrb[0].mxu0 %v367
        %v403 = vpop.f32.mrb[0].mxu0
        %v404 = vadd.f32 %v352, %v403
        %v405 = vpop.f32.mrb[0].mxu0
        %v406 = vpop.f32.mrb[0].mxu0
        %v407 = vpop.f32.mrb[0].mxu0
        %408 = vdwg.mxu0
        %v409 = vmul.f32 %v404, 0.35355338
        %v410 = vpack.c.bf16 %v409, %v409
        %v411 = vpack.c.bf16 %v404, %v404
        %v412 = vld [vmem:[#allocation2] sm:$0xf]
        %v413 = vld [vmem:[#allocation2 + $0x4] sm:$0xf]
        %v414 = vld [vmem:[#allocation2 + $0x8] sm:$0xf]
        %v415 = vld [vmem:[#allocation2 + $0xc] sm:$0xf]
        %v416 = vlaneseq
        %v417 = vshrl.u32 %v416, 7
        %v418 = vsub.s32 0, %v417
        %v419 = vrot.slane %v337, %v418
        %421 = vrot.lane.b32.xlu0 %v411, 96
        %v422 = vpop.permute.xlu0 %421
        %vm423 = vcmask 64512
        %v425 = vsel %vm423, %v410, 0
        %v428 = vsel %vm423, %v422, 0
        %430 = vmatprep.subr.bf16.mxu0 0
        %431 = vmatpush1.bf16.xpose.msra.mxu0 %v428
        %432 = vmatprep.subr.bf16.mxu0 0
        %433 = vmatpush1.bf16.xpose.msra.mxu0 0
        %434 = vmatprep.subr.bf16.mxu0 0
        %435 = vmatpush1.bf16.xpose.msra.mxu0 0
        %436 = vmatprep.subr.bf16.mxu0 0
        %437 = vmatpush1.bf16.xpose.msra.mxu0 0
        %438 = vmatprep.subr.bf16.mxu0 0
        %439 = vmatpush1.bf16.xpose.msra.mxu0 0
        %440 = vmatprep.subr.bf16.mxu0 0
        %441 = vmatpush1.bf16.xpose.msra.mxu0 0
        %442 = vmatprep.subr.bf16.mxu0 0
        %443 = vmatpush1.bf16.xpose.msra.mxu0 0
        %444 = vmatprep.subr.bf16.mxu0 0
        %445 = vmatpush1.bf16.xpose.msra.mxu0 0
        %446 = vmatprep.subr.bf16.mxu0 0
        %447 = vmatpush1.bf16.xpose.msra.mxu0 0
        %448 = vmatprep.subr.bf16.mxu0 0
        %449 = vmatpush1.bf16.xpose.msra.mxu0 0
        %450 = vmatprep.subr.bf16.mxu0 0
        %451 = vmatpush1.bf16.xpose.msra.mxu0 0
        %452 = vmatprep.subr.bf16.mxu0 0
        %453 = vmatpush1.bf16.xpose.msra.mxu0 0
        %454 = vmatprep.subr.bf16.mxu0 0
        %455 = vmatpush1.bf16.xpose.msra.mxu0 0
        %456 = vmatprep.subr.bf16.mxu0 0
        %457 = vmatpush1.bf16.xpose.msra.mxu0 0
        %458 = vmatprep.subr.bf16.mxu0 0
        %459 = vmatpush1.bf16.xpose.msra.mxu0 0
        %460 = vmatprep.subr.bf16.mxu0 0
        %461 = vmatpush1.bf16.xpose.msra.mxu0 0
        %462 = vmatprep.mubr.bf16.mxu0 0
        %463 = vmatmul.mubr.bf16.gmra.mrb[0].mxu0 %v425
        %v464 = vpop.f32.mrb[0].mxu0
        %v465 = vadd.f32 %v335, %v464
        %v466 = vpop.f32.mrb[0].mxu0
        %v467 = vpop.f32.mrb[0].mxu0
        %v468 = vpop.f32.mrb[0].mxu0
        %469 = vdwg.mxu0
        %v470 = vsel %vm423, %v465, -inf
        %471 = vmax.xlane.f32.xlu0 %v470
        %v472 = vpop.xlane.xlu0 %471
        %v473 = vsub.f32 %v465, %v472
        %v474 = vmul.f32 %v473, 1.442695
        %v475 = vpow.pop %v474
        %v476 = vsel %vm423, %v475, 0.0
        %477 = vadd.xlane.f32.xlu0 %v476
        %v478 = vpop.xlane.xlu0 %477
        %v479 = vrcp.pop %v478
        %v480 = vmul.f32 %v475, %v479
        %v481 = vpack.c.bf16 %v480, %v480
        %482 = vrot.lane.b32.xlu0 %v411, 64
        %v483 = vpop.permute.xlu0 %482
        %v485 = vsel %vm423, %v481, 0
        %vm487 = vcmask 1043456
        %v489 = vsel %vm487, %v483, 0
        %491 = vmatprep.subr.bf16.mxu0 0
        %492 = vmatpush1.bf16.msra.mxu0 %v489
        %493 = vmatprep.subr.bf16.mxu0 0
        %494 = vmatpush1.bf16.msra.mxu0 0
        %495 = vmatprep.subr.bf16.mxu0 0
        %496 = vmatpush1.bf16.msra.mxu0 0
        %497 = vmatprep.subr.bf16.mxu0 0
        %498 = vmatpush1.bf16.msra.mxu0 0
        %499 = vmatprep.subr.bf16.mxu0 0
        %500 = vmatpush1.bf16.msra.mxu0 0
        %501 = vmatprep.subr.bf16.mxu0 0
        %502 = vmatpush1.bf16.msra.mxu0 0
        %503 = vmatprep.subr.bf16.mxu0 0
        %504 = vmatpush1.bf16.msra.mxu0 0
        %505 = vmatprep.subr.bf16.mxu0 0
        %506 = vmatpush1.bf16.msra.mxu0 0
        %507 = vmatprep.subr.bf16.mxu0 0
        %508 = vmatpush1.bf16.msra.mxu0 0
        %509 = vmatprep.subr.bf16.mxu0 0
        %510 = vmatpush1.bf16.msra.mxu0 0
        %511 = vmatprep.subr.bf16.mxu0 0
        %512 = vmatpush1.bf16.msra.mxu0 0
        %513 = vmatprep.subr.bf16.mxu0 0
        %514 = vmatpush1.bf16.msra.mxu0 0
        %515 = vmatprep.subr.bf16.mxu0 0
        %516 = vmatpush1.bf16.msra.mxu0 0
        %517 = vmatprep.subr.bf16.mxu0 0
        %518 = vmatpush1.bf16.msra.mxu0 0
        %519 = vmatprep.subr.bf16.mxu0 0
        %520 = vmatpush1.bf16.msra.mxu0 0
        %521 = vmatprep.subr.bf16.mxu0 0
        %522 = vmatpush1.bf16.msra.mxu0 0
        %523 = vmatprep.mubr.bf16.mxu0 0
        %524 = vmatmul.mubr.bf16.gmra.mrb[0].mxu0 %v485
        %v525 = vpop.f32.mrb[0].mxu0
        %v526 = vadd.f32 0.0, %v525
        %v527 = vpop.f32.mrb[0].mxu0
        %v528 = vpop.f32.mrb[0].mxu0
        %v529 = vpop.f32.mrb[0].mxu0
        %530 = vdwg.mxu0
        %v531 = vpack.c.bf16 %v526, %v526
        %v533 = vsel %vm423, %v531, 0
        %v536 = vsel %vm487, %v412, 0
        %538 = vmatprep.subr.bf16.mxu0 0
        %539 = vmatpush1.bf16.msra.mxu0 %v536
        %540 = vmatprep.subr.bf16.mxu0 0
        %541 = vmatpush1.bf16.msra.mxu0 0
        %542 = vmatprep.subr.bf16.mxu0 0
        %543 = vmatpush1.bf16.msra.mxu0 0
        %544 = vmatprep.subr.bf16.mxu0 0
        %545 = vmatpush1.bf16.msra.mxu0 0
        %546 = vmatprep.subr.bf16.mxu0 0
        %547 = vmatpush1.bf16.msra.mxu0 0
        %548 = vmatprep.subr.bf16.mxu0 0
        %549 = vmatpush1.bf16.msra.mxu0 0
        %550 = vmatprep.subr.bf16.mxu0 0
        %551 = vmatpush1.bf16.msra.mxu0 0
        %552 = vmatprep.subr.bf16.mxu0 0
        %553 = vmatpush1.bf16.msra.mxu0 0
        %554 = vmatprep.subr.bf16.mxu0 0
        %555 = vmatpush1.bf16.msra.mxu0 0
        %556 = vmatprep.subr.bf16.mxu0 0
        %557 = vmatpush1.bf16.msra.mxu0 0
        %558 = vmatprep.subr.bf16.mxu0 0
        %559 = vmatpush1.bf16.msra.mxu0 0
        %560 = vmatprep.subr.bf16.mxu0 0
        %561 = vmatpush1.bf16.msra.mxu0 0
        %562 = vmatprep.subr.bf16.mxu0 0
        %563 = vmatpush1.bf16.msra.mxu0 0
        %564 = vmatprep.subr.bf16.mxu0 0
        %565 = vmatpush1.bf16.msra.mxu0 0
        %566 = vmatprep.subr.bf16.mxu0 0
        %567 = vmatpush1.bf16.msra.mxu0 0
        %568 = vmatprep.subr.bf16.mxu0 0
        %569 = vmatpush1.bf16.msra.mxu0 0
        %570 = vmatprep.mubr.bf16.mxu0 0
        %571 = vmatmul.mubr.bf16.gmra.mrb[0].mxu0 %v533
        %v572 = vpop.f32.mrb[0].mxu0
        %v573 = vadd.f32 0.0, %v572
        %v574 = vpop.f32.mrb[0].mxu0
        %v575 = vpop.f32.mrb[0].mxu0
        %v576 = vpop.f32.mrb[0].mxu0
        %577 = vdwg.mxu0
        %v578 = vadd.f32 %v419, %v573
        %580 = vrot.lane.b32.xlu0 %v410, 120
        %v581 = vpop.permute.xlu0 %580
        %582 = vrot.lane.b32.xlu0 %v411, 88
        %v583 = vpop.permute.xlu0 %582
        %v585 = vsel %vm423, %v581, 0
        %v588 = vsel %vm423, %v583, 0
        %590 = vmatprep.subr.bf16.mxu0 0
        %591 = vmatpush1.bf16.xpose.msra.mxu0 %v588
        %592 = vmatprep.subr.bf16.mxu0 0
        %593 = vmatpush1.bf16.xpose.msra.mxu0 0
        %594 = vmatprep.subr.bf16.mxu0 0
        %595 = vmatpush1.bf16.xpose.msra.mxu0 0
        %596 = vmatprep.subr.bf16.mxu0 0
        %597 = vmatpush1.bf16.xpose.msra.mxu0 0
        %598 = vmatprep.subr.bf16.mxu0 0
        %599 = vmatpush1.bf16.xpose.msra.mxu0 0
        %600 = vmatprep.subr.bf16.mxu0 0
        %601 = vmatpush1.bf16.xpose.msra.mxu0 0
        %602 = vmatprep.subr.bf16.mxu0 0
        %603 = vmatpush1.bf16.xpose.msra.mxu0 0
        %604 = vmatprep.subr.bf16.mxu0 0
        %605 = vmatpush1.bf16.xpose.msra.mxu0 0
        %606 = vmatprep.subr.bf16.mxu0 0
        %607 = vmatpush1.bf16.xpose.msra.mxu0 0
        %608 = vmatprep.subr.bf16.mxu0 0
        %609 = vmatpush1.bf16.xpose.msra.mxu0 0
        %610 = vmatprep.subr.bf16.mxu0 0
        %611 = vmatpush1.bf16.xpose.msra.mxu0 0
        %612 = vmatprep.subr.bf16.mxu0 0
        %613 = vmatpush1.bf16.xpose.msra.mxu0 0
        %614 = vmatprep.subr.bf16.mxu0 0
        %615 = vmatpush1.bf16.xpose.msra.mxu0 0
        %616 = vmatprep.subr.bf16.mxu0 0
        %617 = vmatpush1.bf16.xpose.msra.mxu0 0
        %618 = vmatprep.subr.bf16.mxu0 0
        %619 = vmatpush1.bf16.xpose.msra.mxu0 0
        %620 = vmatprep.subr.bf16.mxu0 0
        %621 = vmatpush1.bf16.xpose.msra.mxu0 0
        %622 = vmatprep.mubr.bf16.mxu0 0
        %623 = vmatmul.mubr.bf16.gmra.mrb[0].mxu0 %v585
        %v624 = vpop.f32.mrb[0].mxu0
        %v625 = vadd.f32 %v335, %v624
        %v626 = vpop.f32.mrb[0].mxu0
        %v627 = vpop.f32.mrb[0].mxu0
        %v628 = vpop.f32.mrb[0].mxu0
        %629 = vdwg.mxu0
        %v630 = vsel %vm423, %v625, -inf
        %631 = vmax.xlane.f32.xlu0 %v630
        %v632 = vpop.xlane.xlu0 %631
        %v633 = vsub.f32 %v625, %v632
        %v634 = vmul.f32 %v633, 1.442695
        %v635 = vpow.pop %v634
        %v636 = vsel %vm423, %v635, 0.0
        %637 = vadd.xlane.f32.xlu0 %v636
        %v638 = vpop.xlane.xlu0 %637
        %v639 = vrcp.pop %v638
        %v640 = vmul.f32 %v635, %v639
        %v641 = vpack.c.bf16 %v640, %v640
        %642 = vrot.lane.b32.xlu0 %v411, 56
        %v643 = vpop.permute.xlu0 %642
        %v645 = vsel %vm423, %v641, 0
        %v648 = vsel %vm487, %v643, 0
        %650 = vmatprep.subr.bf16.mxu0 0
        %651 = vmatpush1.bf16.msra.mxu0 %v648
        %652 = vmatprep.subr.bf16.mxu0 0
        %653 = vmatpush1.bf16.msra.mxu0 0
        %654 = vmatprep.subr.bf16.mxu0 0
        %655 = vmatpush1.bf16.msra.mxu0 0
        %656 = vmatprep.subr.bf16.mxu0 0
        %657 = vmatpush1.bf16.msra.mxu0 0
        %658 = vmatprep.subr.bf16.mxu0 0
        %659 = vmatpush1.bf16.msra.mxu0 0
        %660 = vmatprep.subr.bf16.mxu0 0
        %661 = vmatpush1.bf16.msra.mxu0 0
        %662 = vmatprep.subr.bf16.mxu0 0
        %663 = vmatpush1.bf16.msra.mxu0 0
        %664 = vmatprep.subr.bf16.mxu0 0
        %665 = vmatpush1.bf16.msra.mxu0 0
        %666 = vmatprep.subr.bf16.mxu0 0
        %667 = vmatpush1.bf16.msra.mxu0 0
        %668 = vmatprep.subr.bf16.mxu0 0
        %669 = vmatpush1.bf16.msra.mxu0 0
        %670 = vmatprep.subr.bf16.mxu0 0
        %671 = vmatpush1.bf16.msra.mxu0 0
        %672 = vmatprep.subr.bf16.mxu0 0
        %673 = vmatpush1.bf16.msra.mxu0 0
        %674 = vmatprep.subr.bf16.mxu0 0
        %675 = vmatpush1.bf16.msra.mxu0 0
        %676 = vmatprep.subr.bf16.mxu0 0
        %677 = vmatpush1.bf16.msra.mxu0 0
        %678 = vmatprep.subr.bf16.mxu0 0
        %679 = vmatpush1.bf16.msra.mxu0 0
        %680 = vmatprep.subr.bf16.mxu0 0
        %681 = vmatpush1.bf16.msra.mxu0 0
        %682 = vmatprep.mubr.bf16.mxu0 0
        %683 = vmatmul.mubr.bf16.gmra.mrb[0].mxu0 %v645
        %v684 = vpop.f32.mrb[0].mxu0
        %v685 = vadd.f32 0.0, %v684
        %v686 = vpop.f32.mrb[0].mxu0
        %v687 = vpop.f32.mrb[0].mxu0
        %v688 = vpop.f32.mrb[0].mxu0
        %689 = vdwg.mxu0
        %v690 = vpack.c.bf16 %v685, %v685
        %v692 = vsel %vm423, %v690, 0
        %v695 = vsel %vm487, %v413, 0
        %697 = vmatprep.subr.bf16.mxu0 0
        %698 = vmatpush1.bf16.msra.mxu0 %v695
        %699 = vmatprep.subr.bf16.mxu0 0
        %700 = vmatpush1.bf16.msra.mxu0 0
        %701 = vmatprep.subr.bf16.mxu0 0
        %702 = vmatpush1.bf16.msra.mxu0 0
        %703 = vmatprep.subr.bf16.mxu0 0
        %704 = vmatpush1.bf16.msra.mxu0 0
        %705 = vmatprep.subr.bf16.mxu0 0
        %706 = vmatpush1.bf16.msra.mxu0 0
        %707 = vmatprep.subr.bf16.mxu0 0
        %708 = vmatpush1.bf16.msra.mxu0 0
        %709 = vmatprep.subr.bf16.mxu0 0
        %710 = vmatpush1.bf16.msra.mxu0 0
        %711 = vmatprep.subr.bf16.mxu0 0
        %712 = vmatpush1.bf16.msra.mxu0 0
        %713 = vmatprep.subr.bf16.mxu0 0
        %714 = vmatpush1.bf16.msra.mxu0 0
        %715 = vmatprep.subr.bf16.mxu0 0
        %716 = vmatpush1.bf16.msra.mxu0 0
        %717 = vmatprep.subr.bf16.mxu0 0
        %718 = vmatpush1.bf16.msra.mxu0 0
        %719 = vmatprep.subr.bf16.mxu0 0
        %720 = vmatpush1.bf16.msra.mxu0 0
        %721 = vmatprep.subr.bf16.mxu0 0
        %722 = vmatpush1.bf16.msra.mxu0 0
        %723 = vmatprep.subr.bf16.mxu0 0
        %724 = vmatpush1.bf16.msra.mxu0 0
        %725 = vmatprep.subr.bf16.mxu0 0
        %726 = vmatpush1.bf16.msra.mxu0 0
        %727 = vmatprep.subr.bf16.mxu0 0
        %728 = vmatpush1.bf16.msra.mxu0 0
        %729 = vmatprep.mubr.bf16.mxu0 0
        %730 = vmatmul.mubr.bf16.gmra.mrb[0].mxu0 %v692
        %v731 = vpop.f32.mrb[0].mxu0
        %v732 = vadd.f32 0.0, %v731
        %v733 = vpop.f32.mrb[0].mxu0
        %v734 = vpop.f32.mrb[0].mxu0
        %v735 = vpop.f32.mrb[0].mxu0
        %736 = vdwg.mxu0
        %v737 = vadd.f32 %v578, %v732
        %738 = vrot.lane.b32.xlu0 %v410, 112
        %v739 = vpop.permute.xlu0 %738
        %740 = vrot.lane.b32.xlu0 %v411, 80
        %v741 = vpop.permute.xlu0 %740
        %v743 = vsel %vm423, %v739, 0
        %v746 = vsel %vm423, %v741, 0
        %748 = vmatprep.subr.bf16.mxu0 0
        %749 = vmatpush1.bf16.xpose.msra.mxu0 %v746
        %750 = vmatprep.subr.bf16.mxu0 0
        %751 = vmatpush1.bf16.xpose.msra.mxu0 0
        %752 = vmatprep.subr.bf16.mxu0 0
        %753 = vmatpush1.bf16.xpose.msra.mxu0 0
        %754 = vmatprep.subr.bf16.mxu0 0
        %755 = vmatpush1.bf16.xpose.msra.mxu0 0
        %756 = vmatprep.subr.bf16.mxu0 0
        %757 = vmatpush1.bf16.xpose.msra.mxu0 0
        %758 = vmatprep.subr.bf16.mxu0 0
        %759 = vmatpush1.bf16.xpose.msra.mxu0 0
        %760 = vmatprep.subr.bf16.mxu0 0
        %761 = vmatpush1.bf16.xpose.msra.mxu0 0
        %762 = vmatprep.subr.bf16.mxu0 0
        %763 = vmatpush1.bf16.xpose.msra.mxu0 0
        %764 = vmatprep.subr.bf16.mxu0 0
        %765 = vmatpush1.bf16.xpose.msra.mxu0 0
        %766 = vmatprep.subr.bf16.mxu0 0
        %767 = vmatpush1.bf16.xpose.msra.mxu0 0
        %768 = vmatprep.subr.bf16.mxu0 0
        %769 = vmatpush1.bf16.xpose.msra.mxu0 0
        %770 = vmatprep.subr.bf16.mxu0 0
        %771 = vmatpush1.bf16.xpose.msra.mxu0 0
        %772 = vmatprep.subr.bf16.mxu0 0
        %773 = vmatpush1.bf16.xpose.msra.mxu0 0
        %774 = vmatprep.subr.bf16.mxu0 0
        %775 = vmatpush1.bf16.xpose.msra.mxu0 0
        %776 = vmatprep.subr.bf16.mxu0 0
        %777 = vmatpush1.bf16.xpose.msra.mxu0 0
        %778 = vmatprep.subr.bf16.mxu0 0
        %779 = vmatpush1.bf16.xpose.msra.mxu0 0
        %780 = vmatprep.mubr.bf16.mxu0 0
        %781 = vmatmul.mubr.bf16.gmra.mrb[0].mxu0 %v743
        %v782 = vpop.f32.mrb[0].mxu0
        %v783 = vadd.f32 %v335, %v782
        %v784 = vpop.f32.mrb[0].mxu0
        %v785 = vpop.f32.mrb[0].mxu0
        %v786 = vpop.f32.mrb[0].mxu0
        %787 = vdwg.mxu0
        %v788 = vsel %vm423, %v783, -inf
        %789 = vmax.xlane.f32.xlu0 %v788
        %v790 = vpop.xlane.xlu0 %789
        %v791 = vsub.f32 %v783, %v790
        %v792 = vmul.f32 %v791, 1.442695
        %v793 = vpow.pop %v792
        %v794 = vsel %vm423, %v793, 0.0
        %795 = vadd.xlane.f32.xlu0 %v794
        %v796 = vpop.xlane.xlu0 %795
        %v797 = vrcp.pop %v796
        %v798 = vmul.f32 %v793, %v797
        %v799 = vpack.c.bf16 %v798, %v798
        %800 = vrot.lane.b32.xlu0 %v411, 48
        %v801 = vpop.permute.xlu0 %800
        %v803 = vsel %vm423, %v799, 0
        %v806 = vsel %vm487, %v801, 0
        %808 = vmatprep.subr.bf16.mxu0 0
        %809 = vmatpush1.bf16.msra.mxu0 %v806
        %810 = vmatprep.subr.bf16.mxu0 0
        %811 = vmatpush1.bf16.msra.mxu0 0
        %812 = vmatprep.subr.bf16.mxu0 0
        %813 = vmatpush1.bf16.msra.mxu0 0
        %814 = vmatprep.subr.bf16.mxu0 0
        %815 = vmatpush1.bf16.msra.mxu0 0
        %816 = vmatprep.subr.bf16.mxu0 0
        %817 = vmatpush1.bf16.msra.mxu0 0
        %818 = vmatprep.subr.bf16.mxu0 0
        %819 = vmatpush1.bf16.msra.mxu0 0
        %820 = vmatprep.subr.bf16.mxu0 0
        %821 = vmatpush1.bf16.msra.mxu0 0
        %822 = vmatprep.subr.bf16.mxu0 0
        %823 = vmatpush1.bf16.msra.mxu0 0
        %824 = vmatprep.subr.bf16.mxu0 0
        %825 = vmatpush1.bf16.msra.mxu0 0
        %826 = vmatprep.subr.bf16.mxu0 0
        %827 = vmatpush1.bf16.msra.mxu0 0
        %828 = vmatprep.subr.bf16.mxu0 0
        %829 = vmatpush1.bf16.msra.mxu0 0
        %830 = vmatprep.subr.bf16.mxu0 0
        %831 = vmatpush1.bf16.msra.mxu0 0
        %832 = vmatprep.subr.bf16.mxu0 0
        %833 = vmatpush1.bf16.msra.mxu0 0
        %834 = vmatprep.subr.bf16.mxu0 0
        %835 = vmatpush1.bf16.msra.mxu0 0
        %836 = vmatprep.subr.bf16.mxu0 0
        %837 = vmatpush1.bf16.msra.mxu0 0
        %838 = vmatprep.subr.bf16.mxu0 0
        %839 = vmatpush1.bf16.msra.mxu0 0
        %840 = vmatprep.mubr.bf16.mxu0 0
        %841 = vmatmul.mubr.bf16.gmra.mrb[0].mxu0 %v803
        %v842 = vpop.f32.mrb[0].mxu0
        %v843 = vadd.f32 0.0, %v842
        %v844 = vpop.f32.mrb[0].mxu0
        %v845 = vpop.f32.mrb[0].mxu0
        %v846 = vpop.f32.mrb[0].mxu0
        %847 = vdwg.mxu0
        %v848 = vpack.c.bf16 %v843, %v843
        %v850 = vsel %vm423, %v848, 0
        %v853 = vsel %vm487, %v414, 0
        %855 = vmatprep.subr.bf16.mxu0 0
        %856 = vmatpush1.bf16.msra.mxu0 %v853
        %857 = vmatprep.subr.bf16.mxu0 0
        %858 = vmatpush1.bf16.msra.mxu0 0
        %859 = vmatprep.subr.bf16.mxu0 0
        %860 = vmatpush1.bf16.msra.mxu0 0
        %861 = vmatprep.subr.bf16.mxu0 0
        %862 = vmatpush1.bf16.msra.mxu0 0
        %863 = vmatprep.subr.bf16.mxu0 0
        %864 = vmatpush1.bf16.msra.mxu0 0
        %865 = vmatprep.subr.bf16.mxu0 0
        %866 = vmatpush1.bf16.msra.mxu0 0
        %867 = vmatprep.subr.bf16.mxu0 0
        %868 = vmatpush1.bf16.msra.mxu0 0
        %869 = vmatprep.subr.bf16.mxu0 0
        %870 = vmatpush1.bf16.msra.mxu0 0
        %871 = vmatprep.subr.bf16.mxu0 0
        %872 = vmatpush1.bf16.msra.mxu0 0
        %873 = vmatprep.subr.bf16.mxu0 0
        %874 = vmatpush1.bf16.msra.mxu0 0
        %875 = vmatprep.subr.bf16.mxu0 0
        %876 = vmatpush1.bf16.msra.mxu0 0
        %877 = vmatprep.subr.bf16.mxu0 0
        %878 = vmatpush1.bf16.msra.mxu0 0
        %879 = vmatprep.subr.bf16.mxu0 0
        %880 = vmatpush1.bf16.msra.mxu0 0
        %881 = vmatprep.subr.bf16.mxu0 0
        %882 = vmatpush1.bf16.msra.mxu0 0
        %883 = vmatprep.subr.bf16.mxu0 0
        %884 = vmatpush1.bf16.msra.mxu0 0
        %885 = vmatprep.subr.bf16.mxu0 0
        %886 = vmatpush1.bf16.msra.mxu0 0
        %887 = vmatprep.mubr.bf16.mxu0 0
        %888 = vmatmul.mubr.bf16.gmra.mrb[0].mxu0 %v850
        %v889 = vpop.f32.mrb[0].mxu0
        %v890 = vadd.f32 0.0, %v889
        %v891 = vpop.f32.mrb[0].mxu0
        %v892 = vpop.f32.mrb[0].mxu0
        %v893 = vpop.f32.mrb[0].mxu0
        %894 = vdwg.mxu0
        %v895 = vadd.f32 %v737, %v890
        %896 = vrot.lane.b32.xlu0 %v410, 104
        %v897 = vpop.permute.xlu0 %896
        %898 = vrot.lane.b32.xlu0 %v411, 72
        %v899 = vpop.permute.xlu0 %898
        %v901 = vsel %vm423, %v897, 0
        %v904 = vsel %vm423, %v899, 0
        %906 = vmatprep.subr.bf16.mxu0 0
        %907 = vmatpush1.bf16.xpose.msra.mxu0 %v904
        %908 = vmatprep.subr.bf16.mxu0 0
        %909 = vmatpush1.bf16.xpose.msra.mxu0 0
        %910 = vmatprep.subr.bf16.mxu0 0
        %911 = vmatpush1.bf16.xpose.msra.mxu0 0
        %912 = vmatprep.subr.bf16.mxu0 0
        %913 = vmatpush1.bf16.xpose.msra.mxu0 0
        %914 = vmatprep.subr.bf16.mxu0 0
        %915 = vmatpush1.bf16.xpose.msra.mxu0 0
        %916 = vmatprep.subr.bf16.mxu0 0
        %917 = vmatpush1.bf16.xpose.msra.mxu0 0
        %918 = vmatprep.subr.bf16.mxu0 0
        %919 = vmatpush1.bf16.xpose.msra.mxu0 0
        %920 = vmatprep.subr.bf16.mxu0 0
        %921 = vmatpush1.bf16.xpose.msra.mxu0 0
        %922 = vmatprep.subr.bf16.mxu0 0
        %923 = vmatpush1.bf16.xpose.msra.mxu0 0
        %924 = vmatprep.subr.bf16.mxu0 0
        %925 = vmatpush1.bf16.xpose.msra.mxu0 0
        %926 = vmatprep.subr.bf16.mxu0 0
        %927 = vmatpush1.bf16.xpose.msra.mxu0 0
        %928 = vmatprep.subr.bf16.mxu0 0
        %929 = vmatpush1.bf16.xpose.msra.mxu0 0
        %930 = vmatprep.subr.bf16.mxu0 0
        %931 = vmatpush1.bf16.xpose.msra.mxu0 0
        %932 = vmatprep.subr.bf16.mxu0 0
        %933 = vmatpush1.bf16.xpose.msra.mxu0 0
        %934 = vmatprep.subr.bf16.mxu0 0
        %935 = vmatpush1.bf16.xpose.msra.mxu0 0
        %936 = vmatprep.subr.bf16.mxu0 0
        %937 = vmatpush1.bf16.xpose.msra.mxu0 0
        %938 = vmatprep.mubr.bf16.mxu0 0
        %939 = vmatmul.mubr.bf16.gmra.mrb[0].mxu0 %v901
        %v940 = vpop.f32.mrb[0].mxu0
        %v941 = vadd.f32 %v335, %v940
        %v942 = vpop.f32.mrb[0].mxu0
        %v943 = vpop.f32.mrb[0].mxu0
        %v944 = vpop.f32.mrb[0].mxu0
        %945 = vdwg.mxu0
        %v946 = vsel %vm423, %v941, -inf
        %947 = vmax.xlane.f32.xlu0 %v946
        %v948 = vpop.xlane.xlu0 %947
        %v949 = vsub.f32 %v941, %v948
        %v950 = vmul.f32 %v949, 1.442695
        %v951 = vpow.pop %v950
        %v952 = vsel %vm423, %v951, 0.0
        %953 = vadd.xlane.f32.xlu0 %v952
        %v954 = vpop.xlane.xlu0 %953
        %v955 = vrcp.pop %v954
        %v956 = vmul.f32 %v951, %v955
        %v957 = vpack.c.bf16 %v956, %v956
        %958 = vrot.lane.b32.xlu0 %v411, 40
        %v959 = vpop.permute.xlu0 %958
        %v961 = vsel %vm423, %v957, 0
        %v964 = vsel %vm487, %v959, 0
        %966 = vmatprep.subr.bf16.mxu0 0
        %967 = vmatpush1.bf16.msra.mxu0 %v964
        %968 = vmatprep.subr.bf16.mxu0 0
        %969 = vmatpush1.bf16.msra.mxu0 0
        %970 = vmatprep.subr.bf16.mxu0 0
        %971 = vmatpush1.bf16.msra.mxu0 0
        %972 = vmatprep.subr.bf16.mxu0 0
        %973 = vmatpush1.bf16.msra.mxu0 0
        %974 = vmatprep.subr.bf16.mxu0 0
        %975 = vmatpush1.bf16.msra.mxu0 0
        %976 = vmatprep.subr.bf16.mxu0 0
        %977 = vmatpush1.bf16.msra.mxu0 0
        %978 = vmatprep.subr.bf16.mxu0 0
        %979 = vmatpush1.bf16.msra.mxu0 0
        %980 = vmatprep.subr.bf16.mxu0 0
        %981 = vmatpush1.bf16.msra.mxu0 0
        %982 = vmatprep.subr.bf16.mxu0 0
        %983 = vmatpush1.bf16.msra.mxu0 0
        %984 = vmatprep.subr.bf16.mxu0 0
        %985 = vmatpush1.bf16.msra.mxu0 0
        %986 = vmatprep.subr.bf16.mxu0 0
        %987 = vmatpush1.bf16.msra.mxu0 0
        %988 = vmatprep.subr.bf16.mxu0 0
        %989 = vmatpush1.bf16.msra.mxu0 0
        %990 = vmatprep.subr.bf16.mxu0 0
        %991 = vmatpush1.bf16.msra.mxu0 0
        %992 = vmatprep.subr.bf16.mxu0 0
        %993 = vmatpush1.bf16.msra.mxu0 0
        %994 = vmatprep.subr.bf16.mxu0 0
        %995 = vmatpush1.bf16.msra.mxu0 0
        %996 = vmatprep.subr.bf16.mxu0 0
        %997 = vmatpush1.bf16.msra.mxu0 0
        %998 = vmatprep.mubr.bf16.mxu0 0
        %999 = vmatmul.mubr.bf16.gmra.mrb[0].mxu0 %v961
        %v1000 = vpop.f32.mrb[0].mxu0
        %v1001 = vadd.f32 0.0, %v1000
        %v1002 = vpop.f32.mrb[0].mxu0
        %v1003 = vpop.f32.mrb[0].mxu0
        %v1004 = vpop.f32.mrb[0].mxu0
        %1005 = vdwg.mxu0
        %v1006 = vpack.c.bf16 %v1001, %v1001
        %v1008 = vsel %vm423, %v1006, 0
        %v1011 = vsel %vm487, %v415, 0
        %1013 = vmatprep.subr.bf16.mxu0 0
        %1014 = vmatpush1.bf16.msra.mxu0 %v1011
        %1015 = vmatprep.subr.bf16.mxu0 0
        %1016 = vmatpush1.bf16.msra.mxu0 0
        %1017 = vmatprep.subr.bf16.mxu0 0
        %1018 = vmatpush1.bf16.msra.mxu0 0
        %1019 = vmatprep.subr.bf16.mxu0 0
        %1020 = vmatpush1.bf16.msra.mxu0 0
        %1021 = vmatprep.subr.bf16.mxu0 0
        %1022 = vmatpush1.bf16.msra.mxu0 0
        %1023 = vmatprep.subr.bf16.mxu0 0
        %1024 = vmatpush1.bf16.msra.mxu0 0
        %1025 = vmatprep.subr.bf16.mxu0 0
        %1026 = vmatpush1.bf16.msra.mxu0 0
        %1027 = vmatprep.subr.bf16.mxu0 0
        %1028 = vmatpush1.bf16.msra.mxu0 0
        %1029 = vmatprep.subr.bf16.mxu0 0
        %1030 = vmatpush1.bf16.msra.mxu0 0
        %1031 = vmatprep.subr.bf16.mxu0 0
        %1032 = vmatpush1.bf16.msra.mxu0 0
        %1033 = vmatprep.subr.bf16.mxu0 0
        %1034 = vmatpush1.bf16.msra.mxu0 0
        %1035 = vmatprep.subr.bf16.mxu0 0
        %1036 = vmatpush1.bf16.msra.mxu0 0
        %1037 = vmatprep.subr.bf16.mxu0 0
        %1038 = vmatpush1.bf16.msra.mxu0 0
        %1039 = vmatprep.subr.bf16.mxu0 0
        %1040 = vmatpush1.bf16.msra.mxu0 0
        %1041 = vmatprep.subr.bf16.mxu0 0
        %1042 = vmatpush1.bf16.msra.mxu0 0
        %1043 = vmatprep.subr.bf16.mxu0 0
        %1044 = vmatpush1.bf16.msra.mxu0 0
        %1045 = vmatprep.mubr.bf16.mxu0 0
        %1046 = vmatmul.mubr.bf16.gmra.mrb[0].mxu0 %v1008
        %v1047 = vpop.f32.mrb[0].mxu0
        %v1048 = vadd.f32 0.0, %v1047
        %v1049 = vpop.f32.mrb[0].mxu0
        %v1050 = vpop.f32.mrb[0].mxu0
        %v1051 = vpop.f32.mrb[0].mxu0
        %1052 = vdwg.mxu0
        %v1053 = vadd.f32 %v895, %v1048
        %v1054 = vadd.f32 %v334, %v1053
        %v1055 = vsel %vm365, %v1054, 0.0
        %1056 = vadd.xlane.f32.xlu0 %v1055
        %v1057 = vpop.xlane.xlu0 %1056
        %v1058 = vrcp.pop 32.0
        %v1059 = vmul.f32 %v1057, %v1058
        %v1060 = vsub.f32 %v1054, %v1059
        %v1061 = vmul.f32 %v1060, %v1060
        %v1062 = vsel %vm365, %v1061, 0.0
        %1063 = vadd.xlane.f32.xlu0 %v1062
        %v1064 = vpop.xlane.xlu0 %1063
        %v1065 = vmul.f32 %v1064, %v1058
        %v1066 = vadd.f32 %v1065, 1e-05
        %v1067 = vrsqrt.pop %v1066
        %v1068 = vmul.f32 %v1060, %v1067
        %v1069 = vlaneseq
        %v1070 = vshrl.u32 %v1069, 7
        %v1071 = vsub.s32 0, %v1070
        %v1072 = vrot.slane %v340, %v1071
        %v1073 = vmul.f32 %v1068, %v1072
        %v1074 = vlaneseq
        %v1075 = vshrl.u32 %v1074, 7
        %v1076 = vsub.s32 0, %v1075
        %v1077 = vrot.slane %v341, %v1076
        %v1078 = vadd.f32 %v1073, %v1077
        %v1079 = vpack.c.bf16 %v1078, %v1078
        %v1080 = vld [vmem:[#allocation5] sm:$0xf]
        %v1081 = vld [vmem:[#allocation5 + $0x4] sm:$0xf]
        %v1082 = vld [vmem:[#allocation5 + $0x8] sm:$0xf]
        %v1083 = vld [vmem:[#allocation5 + $0xc] sm:$0xf]
        %v1084 = vlaneseq
        %v1085 = vshrl.u32 %v1084, 7
        %v1086 = vsub.s32 0, %v1085
        %v1087 = vrot.slane %v338, %v1086
        %v1092 = vunpack.c.l.b16 %v1080
        %v1093 = vunpack.c.l.b16 %v1081
        %v1094 = vunpack.c.l.b16 %v1082
        %v1095 = vunpack.c.l.b16 %v1083
        %v1096 = vpack.c.b16 %v1093, %v1092
        %v1097 = vpack.c.b16 %v1095, %v1094
        %v1101 = vsel %vm365, %v1079, 0
        %1103 = vmatprep.subr.bf16.mxu0 0
        %1104 = vmatpush1.bf16.msra.mxu0 %v1096
        %1105 = vmatprep.subr.bf16.mxu0 0
        %1106 = vmatpush1.bf16.msra.mxu0 %v1097
        %1107 = vmatprep.subr.bf16.mxu0 0
        %1108 = vmatpush1.bf16.msra.mxu0 0
        %1109 = vmatprep.subr.bf16.mxu0 0
        %1110 = vmatpush1.bf16.msra.mxu0 0
        %1111 = vmatprep.subr.bf16.mxu0 0
        %1112 = vmatpush1.bf16.msra.mxu0 0
        %1113 = vmatprep.subr.bf16.mxu0 0
        %1114 = vmatpush1.bf16.msra.mxu0 0
        %1115 = vmatprep.subr.bf16.mxu0 0
        %1116 = vmatpush1.bf16.msra.mxu0 0
        %1117 = vmatprep.subr.bf16.mxu0 0
        %1118 = vmatpush1.bf16.msra.mxu0 0
        %1119 = vmatprep.subr.bf16.mxu0 0
        %1120 = vmatpush1.bf16.msra.mxu0 0
        %1121 = vmatprep.subr.bf16.mxu0 0
        %1122 = vmatpush1.bf16.msra.mxu0 0
        %1123 = vmatprep.subr.bf16.mxu0 0
        %1124 = vmatpush1.bf16.msra.mxu0 0
        %1125 = vmatprep.subr.bf16.mxu0 0
        %1126 = vmatpush1.bf16.msra.mxu0 0
        %1127 = vmatprep.subr.bf16.mxu0 0
        %1128 = vmatpush1.bf16.msra.mxu0 0
        %1129 = vmatprep.subr.bf16.mxu0 0
        %1130 = vmatpush1.bf16.msra.mxu0 0
        %1131 = vmatprep.subr.bf16.mxu0 0
        %1132 = vmatpush1.bf16.msra.mxu0 0
        %1133 = vmatprep.subr.bf16.mxu0 0
        %1134 = vmatpush1.bf16.msra.mxu0 0
        %1135 = vmatprep.mubr.bf16.mxu0 0
        %1136 = vmatmul.mubr.bf16.gmra.mrb[0].mxu0 %v1101
        %v1137 = vpop.f32.mrb[0].mxu0
        %v1138 = vadd.f32 %v1087, %v1137
        %v1139 = vpop.f32.mrb[0].mxu0
        %v1140 = vpop.f32.mrb[0].mxu0
        %v1141 = vpop.f32.mrb[0].mxu0
        %1142 = vdwg.mxu0
        %v1143 = vmul.f32 %v1138, 0.5
        %v1144 = vmul.f32 %v1138, 0.044715
        %v1145 = vmul.f32 %v1144, %v1138
        %v1146 = vmul.f32 %v1145, %v1138
        %v1147 = vadd.f32 %v1138, %v1146
        %v1148 = vmul.f32 %v1147, 0.7978846
        %v1149 = vtanh.pop %v1148
        %v1150 = vadd.f32 %v1149, 1.0
        %v1151 = vmul.f32 %v1143, %v1150
        %v1152 = vpack.c.bf16 %v1151, %v1151
        %v1153 = vld [vmem:[%s5] sm:$0xf]
        %v1154 = vld [vmem:[%s5 + $0x4] sm:$0xf]
        %v1155 = vld [vmem:[%s5 + $0x8] sm:$0xf]
        %v1156 = vld [vmem:[%s5 + $0xc] sm:$0xf]
        %v1157 = vld [vmem:[%s5 + $0x10] sm:$0xf]
        %v1158 = vld [vmem:[%s5 + $0x14] sm:$0xf]
        %v1159 = vld [vmem:[%s5 + $0x18] sm:$0xf]
        %v1160 = vld [vmem:[%s5 + $0x1c] sm:$0xf]
        %v1161 = vlaneseq
        %v1162 = vshrl.u32 %v1161, 7
        %v1163 = vsub.s32 0, %v1162
        %v1164 = vrot.slane %v339, %v1163
        %v1173 = vunpack.c.l.b16 %v1153
        %v1174 = vunpack.c.l.b16 %v1154
        %v1175 = vunpack.c.l.b16 %v1155
        %v1176 = vunpack.c.l.b16 %v1156
        %v1177 = vunpack.c.l.b16 %v1157
        %v1178 = vunpack.c.l.b16 %v1158
        %v1179 = vunpack.c.l.b16 %v1159
        %v1180 = vunpack.c.l.b16 %v1160
        %v1181 = vpack.c.b16 %v1174, %v1173
        %v1182 = vpack.c.b16 %v1176, %v1175
        %v1183 = vpack.c.b16 %v1178, %v1177
        %v1184 = vpack.c.b16 %v1180, %v1179
        %vm1189 = vcmask 523264
        %v1191 = vsel %vm1189, %v1152, 0
        %1193 = vmatprep.subr.bf16.mxu0 0
        %1194 = vmatpush1.bf16.msra.mxu0 %v1181
        %1195 = vmatprep.subr.bf16.mxu0 0
        %1196 = vmatpush1.bf16.msra.mxu0 %v1182
        %1197 = vmatprep.subr.bf16.mxu0 0
        %1198 = vmatpush1.bf16.msra.mxu0 %v1183
        %1199 = vmatprep.subr.bf16.mxu0 0
        %1200 = vmatpush1.bf16.msra.mxu0 %v1184
        %1201 = vmatprep.subr.bf16.mxu0 0
        %1202 = vmatpush1.bf16.msra.mxu0 0
        %1203 = vmatprep.subr.bf16.mxu0 0
        %1204 = vmatpush1.bf16.msra.mxu0 0
        %1205 = vmatprep.subr.bf16.mxu0 0
        %1206 = vmatpush1.bf16.msra.mxu0 0
        %1207 = vmatprep.subr.bf16.mxu0 0
        %1208 = vmatpush1.bf16.msra.mxu0 0
        %1209 = vmatprep.subr.bf16.mxu0 0
        %1210 = vmatpush1.bf16.msra.mxu0 0
        %1211 = vmatprep.subr.bf16.mxu0 0
        %1212 = vmatpush1.bf16.msra.mxu0 0
        %1213 = vmatprep.subr.bf16.mxu0 0
        %1214 = vmatpush1.bf16.msra.mxu0 0
        %1215 = vmatprep.subr.bf16.mxu0 0
        %1216 = vmatpush1.bf16.msra.mxu0 0
        %1217 = vmatprep.subr.bf16.mxu0 0
        %1218 = vmatpush1.bf16.msra.mxu0 0
        %1219 = vmatprep.subr.bf16.mxu0 0
        %1220 = vmatpush1.bf16.msra.mxu0 0
        %1221 = vmatprep.subr.bf16.mxu0 0
        %1222 = vmatpush1.bf16.msra.mxu0 0
        %1223 = vmatprep.subr.bf16.mxu0 0
        %1224 = vmatpush1.bf16.msra.mxu0 0
        %1225 = vmatprep.mubr.bf16.mxu0 0
        %1226 = vmatmul.mubr.bf16.gmra.mrb[0].mxu0 %v1191
        %v1227 = vpop.f32.mrb[0].mxu0
        %v1228 = vadd.f32 %v1164, %v1227
        %v1229 = vpop.f32.mrb[0].mxu0
        %v1230 = vpop.f32.mrb[0].mxu0
        %v1231 = vpop.f32.mrb[0].mxu0
        %1232 = vdwg.mxu0
        %v1233 = vadd.f32 %v1078, %v1228
        %v1234 = vsel %vm365, %v1233, 0.0
        %1235 = vadd.xlane.f32.xlu0 %v1234
        %v1236 = vpop.xlane.xlu0 %1235
        %v1237 = vmul.f32 %v1236, %v1058
        %v1238 = vsub.f32 %v1233, %v1237
        %v1239 = vmul.f32 %v1238, %v1238
        %v1240 = vsel %vm365, %v1239, 0.0
        %1241 = vadd.xlane.f32.xlu0 %v1240
        %v1242 = vpop.xlane.xlu0 %1241
        %v1243 = vmul.f32 %v1242, %v1058
        %v1244 = vadd.f32 %v1243, 1e-05
        %v1245 = vrsqrt.pop %v1244
        %v1246 = vmul.f32 %v1238, %v1245
        %v1247 = vlaneseq
        %v1248 = vshrl.u32 %v1247, 7
        %v1249 = vsub.s32 0, %v1248
        %v1250 = vrot.slane %v342, %v1249
        %v1251 = vmul.f32 %v1246, %v1250
        %v1252 = vlaneseq
        %v1253 = vshrl.u32 %v1252, 7
        %v1254 = vsub.s32 0, %v1253
        %v1255 = vrot.slane %v343, %v1254
        %v1256 = vadd.f32 %v1251, %v1255
        %1257 = vst.msk [vmem:[%s324] sm:$0xff] %vm365, %v1256
        %s1258 = sand.u32 %s188, 1
        %s1259 = scalar_lea.sflag [#allocation4], %s1258
        %s1260 = sand.u32 %s188, 1
        %s1261 = smul.addr %s1260, 8
        %s1262 = scalar_lea.vmem [#allocation8], %s1261
        // Predicated region
        $region61: #{bart_encoder_layer.1} parent=47 // pred_check
          %p1263 = pneg %p198
        $region62: #{bart_encoder_layer.1} parent=47 // pred_check_branch
          %1265 = sbr.rel (%p1263) target = $region64
        $region63: #{bart_encoder_layer.1} parent=47 // pred_region
          %s1267 = ssub.s32 128, 128
          %1268 = vsyncadd %s1259, %s1267
          %s1269 = smul.addr %s23, 128
          %s1270 = scalar_lea.hbm %s7, %s1269
          %s1272 = sshll.u32 %s1262, 4
          %s1273 = int_to_ptr.vmem [resolvable:$true] %s1272
          %1275 = dma.vmem_to_hbm [thread:$0]  %s1273, 128, %s1270, %s1259
        $region64: #{bart_encoder_layer.1} parent=47 // pred_fallthru
          _
      $region48: #{bart_encoder_layer.1} parent=5 // pred_fallthru
        _
      %p1276 = scmp.le.s32.totalorder 2, %s18
      // Predicated region
      $region65: #{bart_encoder_layer.1} parent=5 // pred_check
        %p1277 = pneg %p1276
      $region66: #{bart_encoder_layer.1} parent=5 // pred_check_branch
        %1279 = sbr.rel (%p1277) target = $region68
      $region67: #{bart_encoder_layer.1} parent=5 // pred_region
        %s1280 = ssub.s32 %s18, 2
        // Predicated region
        $region69: #{bart_encoder_layer.1} parent=67 // pred_check
          %p1281 = pneg %p204
        $region70: #{bart_encoder_layer.1} parent=67 // pred_check_branch
          %1283 = sbr.rel (%p1281) target = $region72
        $region71: #{bart_encoder_layer.1} parent=67 // pred_region
          %s1284 = sand.u32 %s189, 1
          %s1285 = scalar_lea.sflag [#allocation4], %s1284
          %s1286 = sand.u32 %s189, 1
          %s1287 = smul.addr %s1286, 8
          %s1288 = scalar_lea.vmem [#allocation8], %s1287
          %1289 = dma.done %s1285, 128
        $region72: #{bart_encoder_layer.1} parent=67 // pred_fallthru
          _
      $region68: #{bart_encoder_layer.1} parent=5 // pred_fallthru
        _
    $region6: #{bart_encoder_layer.1} parent=1 // loop_footer
      %s22 = sadd.s32 1, %s18
    $region7: #{bart_encoder_layer.1} parent=1 // loop_footer_branch
      %17 = sbr.rel target = $region3
    $region8: #{bart_encoder_layer.1} parent=1 // loop_exit
      _
    %1290 = vsyncpa [#allocation3], 1
    %s1291 = scalar_lea.sflag [#allocation3], 1
    %1292 = vsyncpa %s1291, 1
    %1293 = vsyncpa [#allocation6], 1
    %1294 = vsyncpa [#allocation4], 1
    %s1295 = scalar_lea.sflag [#allocation4], 1
    %1296 = vsyncpa %s1295, 1

</llo_original>
